<compile_context>
chip_gen: v7x
topology: tpu7x:2x2x1
jax: 0.10.0
libtpu: 0.0.40
codegen_flags: <defaults>
</compile_context>

<pallas_src>
import functools
import math

import jax
import jax.numpy as jnp
from jax.experimental import pallas as pl
from jax.experimental.pallas import tpu as pltpu


# ----------------------------------------------------------------------------
# Kernel
# ----------------------------------------------------------------------------
def _pe_kernel(params_ref, o_ref):
    """params_ref: (2, lane_w) f32 rows = [freq_pack, bias] per lane.
       o_ref:      (tile_rows, lane_w) output block."""
    tm = o_ref.shape[0]

    freq_pack = params_ref[0:1, :]                      # (1, lane_w) = pack*freq
    bias = params_ref[1:2, :]                           # (1, lane_w) = pos_off*freq + phase

    # Per-grid-step bias: fold the block's base position into a (1, lane_w)
    # vector once per step (lane_w/128 vregs of work, not per element).
    base_rows = (pl.program_id(0) * tm).astype(jnp.float32)
    step_bias = base_rows * freq_pack + bias            # (1, lane_w)

    # Row index as a single f32 column; broadcasting does the rest.
    rowf = jax.lax.broadcasted_iota(jnp.int32, (tm, 1), 0).astype(jnp.float32)

    # sin for even features; cos(x) = sin(x + pi/2) for odd features
    # -> exactly one EUP transcendental per element.
    o_ref[...] = jnp.sin(rowf * freq_pack + step_bias).astype(o_ref.dtype)


# ----------------------------------------------------------------------------
# Wrapper
# ----------------------------------------------------------------------------
_BLOCK_BYTES = 4 * 1024 * 1024  # per-block cap; double-buffered => <= 8 MiB VMEM


def _round_up(x: int, m: int) -> int:
    return (x + m - 1) // m * m


def _tensorcores_per_chip() -> int:
    """Best-effort TensorCore count per chip (perf heuristic only)."""
    try:
        kind = (jax.devices()[0].device_kind or "").lower()
    except Exception:
        return 1
    if "v7" in kind:
        return 2            # v7x: 2 TCs per chip
    if "v4" in kind or "v5p" in kind:
        return 2            # megacore
    return 1


def _choose_pack(d_model: int, length: int, max_lane: int = 1024) -> int:
    """How many consecutive positions to pack along the 128-lane axis."""
    if d_model % 128 == 0:
        return 1                                   # already lane-aligned
    lane_w = math.lcm(d_model, 128)
    if lane_w <= max_lane:
        pack = lane_w // d_model
        if length % pack == 0:
            return pack
    return 1                                       # lane-sparse fallback


def positional_encoding(length: int, d_model: int = 512, tile_rows=None,
                        dtype=jnp.float32):
    """Returns the positional-encoding table of shape (1, length, d_model)."""
    assert d_model % 2 == 0, "d_model must be even (matches PyTorch module)"
    assert length >= 1

    # ---- lane-dense packing: `pack` consecutive positions per output row ----
    pack = _choose_pack(d_model, length)
    lane_w = pack * d_model
    rows = length // pack

    # ---- per-lane constants, computed once outside the kernel ----
    lane = jnp.arange(lane_w, dtype=jnp.int32)
    feat = lane % d_model
    # Reference div_term: exp(2k * -(ln 10000 / d_model)); features 2k and
    # 2k+1 share the same frequency.
    freq = jnp.exp((feat - feat % 2).astype(jnp.float32)
                   * (-math.log(10000.0) / d_model))
    phase = jnp.where(feat % 2 == 0, 0.0, 0.5 * math.pi).astype(jnp.float32)
    pos_off = (lane // d_model).astype(jnp.float32)
    freq_pack = freq * float(pack)
    bias = pos_off * freq + phase
    params = jnp.stack([freq_pack, bias], axis=0)          # (2, lane_w)

    # ---- tiling over the (packed) position axis ----
    row_bytes = lane_w * jnp.dtype(dtype).itemsize
    max_rows_by_bytes = max(8, (_BLOCK_BYTES // row_bytes) // 8 * 8)
    ncores = _tensorcores_per_chip()

    if tile_rows is None:
        if ncores <= 1:
            # Single-TC chips: one full-array block when it fits the byte cap,
            # else the biggest byte-capped block (>=512-row tiles sit at ~85%
            # of the HBM-store roofline).
            tile_rows = max_rows_by_bytes
        else:
            # Multi-TC chips: smallest multiple of `ncores` grid steps whose
            # blocks respect the byte cap -> even split, no straggler core.
            n = ncores
            while _round_up(pl.cdiv(rows, n), 8) > max_rows_by_bytes:
                n += ncores
            tile_rows = _round_up(pl.cdiv(rows, n), 8)

    # Legality: block rows must be a multiple of 8 or equal the full extent.
    if tile_rows >= rows or rows < 8:
        tile_rows = rows                       # single full-array block
    else:
        tile_rows = max(8, (tile_rows // 8) * 8)
    grid_m = pl.cdiv(rows, tile_rows)          # partial tail block is masked

    pe = pl.pallas_call(
        _pe_kernel,
        out_shape=jax.ShapeDtypeStruct((rows, lane_w), dtype),
        grid_spec=pltpu.PrefetchScalarGridSpec(
            num_scalar_prefetch=0,
            grid=(grid_m,),
            in_specs=[pl.BlockSpec((2, lane_w), lambda i: (0, 0))],
            out_specs=pl.BlockSpec((tile_rows, lane_w), lambda i: (i, 0)),
        ),
        compiler_params=pltpu.CompilerParams(
            dimension_semantics=("parallel",)),
    )(params)

    # (rows, pack*d_model) row-major == (length, d_model) row-major.
    return pe.reshape(1, length, d_model)


# ----------------------------------------------------------------------------
# Pure-JAX reference (identical to the PyTorch buffer construction)
# ----------------------------------------------------------------------------
def _reference(length: int, d_model: int):
    pos = jnp.arange(length, dtype=jnp.float32)[:, None]
    div_term = jnp.exp(jnp.arange(0, d_model, 2, dtype=jnp.float32)
                       * (-math.log(10000.0) / d_model))
    pe = jnp.zeros((length, d_model), dtype=jnp.float32)
    pe = pe.at[:, 0::2].set(jnp.sin(pos * div_term))
    pe = pe.at[:, 1::2].set(jnp.cos(pos * div_term))
    return pe[None]


if __name__ == "__main__":
    # forward() takes an integer `length` — no tensor inputs.
    # (PRNGKey kept only for harness convention / determinism.)
    _ = jax.random.PRNGKey(0)

    # (length, d_model, tile_rows override)
    test_cases = [
        (512, 32, None),   # pack=4, auto tiling (single block on 1-TC chips)
        (512, 32, 32),     # forced multi-step grid: verifies per-step base bias
        (16, 32, None),    # tiny case, full-array block (rows < 8)
        (256, 48, None),   # lcm(48,128)=384 -> pack=8 lane-dense path
        (40, 100, 16),     # lcm too wide -> unpacked fallback + masked tail
        (64, 512, None),   # default transformer width, lane-aligned
    ]
    for length, d_model, tr in test_cases:
        out = jax.block_until_ready(
            positional_encoding(length, d_model, tile_rows=tr))
        ref = _reference(length, d_model)
        assert out.shape == (1, length, d_model), (length, d_model, out.shape)
        # cos(x)=sin(x+pi/2) rewrite introduces ~ulp(angle)-level differences.
        assert jnp.allclose(out, ref, atol=1e-4, rtol=1e-4), (length, d_model)

    print("KERNEL_OK")
</pallas_src>

<mosaic_0001>
module attributes {stable_mosaic.version = 11 : i64} {
  func.func @_pe_kernel(%arg0: i32, %arg1: memref<2x128xf32, #tpu.memory_space<vmem>>, %arg2: memref<128x128xf32, #tpu.memory_space<vmem>>) attributes {dimension_semantics = [#tpu.dimension_semantics<parallel>], iteration_bounds = array<i64: 1>, scalar_prefetch = 0 : i64, scratch_operands = 0 : i64, tpu.core_type = #tpu.core_type<tc>, window_params = [{pipeline_mode = #tpu.pipeline_mode<synchronous>, transform_indices = @transform_0, window_bounds = array<i64: 2, 128>}, {transform_indices = @transform_1, window_bounds = array<i64: 128, 128>}]} {
    %c0 = arith.constant 0 : index
    %c0_0 = arith.constant 0 : index
    %0 = vector.load %arg1[%c0, %c0_0] : memref<2x128xf32, #tpu.memory_space<vmem>>, vector<1x128xf32>
    %c1 = arith.constant 1 : index
    %c0_1 = arith.constant 0 : index
    %1 = vector.load %arg1[%c1, %c0_1] : memref<2x128xf32, #tpu.memory_space<vmem>>, vector<1x128xf32>
    %c128_i32 = arith.constant 128 : i32
    %2 = arith.muli %arg0, %c128_i32 : i32
    %3 = arith.sitofp %2 : i32 to f32
    %4 = vector.broadcast %3 : f32 to vector<1x128xf32>
    %5 = arith.mulf %4, %0 : vector<1x128xf32>
    %6 = arith.addf %5, %1 : vector<1x128xf32>
    %7 = tpu.iota {dimensions = array<i32: 0>} : vector<128x1xi32>
    %8 = arith.sitofp %7 : vector<128x1xi32> to vector<128x1xf32>
    %9 = vector.broadcast %8 : vector<128x1xf32> to vector<128x128xf32>
    %10 = vector.broadcast %0 : vector<1x128xf32> to vector<128x128xf32>
    %11 = arith.mulf %9, %10 : vector<128x128xf32>
    %12 = vector.broadcast %6 : vector<1x128xf32> to vector<128x128xf32>
    %13 = arith.addf %11, %12 : vector<128x128xf32>
    %14 = math.sin %13 : vector<128x128xf32>
    %c0_2 = arith.constant 0 : index
    %c0_3 = arith.constant 0 : index
    %15 = vector.load %arg2[%c0_2, %c0_3] : memref<128x128xf32, #tpu.memory_space<vmem>>, vector<128x128xf32>
    tpu.vector_store %arg2[%c0_2, %c0_3], %14 {strides = array<i32>} : memref<128x128xf32, #tpu.memory_space<vmem>>, vector<128x128xf32>,
    return
  }
  func.func @transform_0(%arg0: i32) -> (i32, i32) {
    %c0_i32 = arith.constant 0 : i32
    %c0_i32_0 = arith.constant 0 : i32
    %c0_i32_1 = arith.constant 0 : i32
    return %c0_i32, %c0_i32_0 : i32, i32
  }
  func.func @transform_1(%arg0: i32) -> (i32, i32) {
    %c0_i32 = arith.constant 0 : i32
    %c0_i32_0 = arith.constant 0 : i32
    return %arg0, %c0_i32 : i32, i32
  }
}

</mosaic_0001>

<llo_original>
// kernel: tpu_custom_call.1
$region0: #{tpu_custom_call.1}
  #allocation0 [shape = 'u32[]', space=smem, size = 0x4, offset = 0x4, fixed_abs, tag = 'smem constant byte address 0x4 - core index']
  #allocation1 [shape = 'u32[144,128]{1,0:T(1,128)}', space=vmem, size = 0x12000, scoped, tag = 'internal scratch']
  %s0 = inlined_call_operand.hbm [shape: f32[2,128], index: 0, kind: input, shape index: {}]
  %s1 = inlined_call_operand.hbm [shape: f32[128,128], index: 1, kind: output, shape index: {}]
  %s2 = sld [smem:[#allocation0]]
  $region18: #{tpu_custom_call.1} parent=0
    _
  %s4 = ssub.s32 1, %s2
  %s5 = scalar_select 0, %s4, %s2
  $region1: #{tpu_custom_call.1} parent=0
    #allocation2 [shape = 'u8[1024]{0}', space=vmem, size = 0x400, scoped, tag = 'input window, operand 0, single buffered']
    #allocation3 [shape = 's32[1]{0}', space=sflag, size = 0x4, scoped, tag = 'scoped memory for tpu_custom_call.1']
    #allocation4 [shape = 's32[1]{0}', space=sflag, size = 0x4, scoped, tag = 'scoped memory for tpu_custom_call.1']
    #allocation5 [shape = 'u8[65536]{0}', space=vmem, size = 0x10000, scoped, tag = 'output window, operand 0, single buffered']
    %6 = vsyncpa [#allocation3], 0
    %7 = vsyncpa [#allocation4], 0
    // Predicated region
    $region2: #{tpu_custom_call.1} parent=1 // pred_check
      _
    $region3: #{tpu_custom_call.1} parent=1 // pred_check_branch
      %9 = sbr.rel (0) target = $region5
    $region4: #{tpu_custom_call.1} parent=1 // pred_region
      %s11 = ssub.s32 32, 32
      %12 = vsyncadd [#allocation3], %s11
      %s14 = sshll.u32 [#allocation2], 4
      %s15 = int_to_ptr.vmem [resolvable:$true] %s14
      %17 = dma.hbm_to_vmem [thread:$0]  %s0, 32, %s15, [#allocation3]
    $region5: #{tpu_custom_call.1} parent=1 // pred_fallthru
      _
    // Predicated region
    $region6: #{tpu_custom_call.1} parent=1 // pred_check
      _
    $region7: #{tpu_custom_call.1} parent=1 // pred_check_branch
      %19 = sbr.rel (0) target = $region9
    $region8: #{tpu_custom_call.1} parent=1 // pred_region
      %20 = dma.done [#allocation3], 32
    $region9: #{tpu_custom_call.1} parent=1 // pred_fallthru
      _
    %v21 = vld [vmem:[#allocation2] sm:$0x1]
    %v22 = vld [vmem:[#allocation2 + $0x1] sm:$0x1]
    %s23 = smul.u32 0, 128
    %s24 = scvt.s32.f32 %s23
    %v25 = vstv %s24
    %v26 = vmul.f32 %v25, %v21
    %v27 = vadd.f32 %v26, %v22
    %v28 = vlaneseq
    %v29 = vshrl.u32 %v28, 7
    %v30 = vadd.s32 %v29, 8
    %v31 = vadd.s32 %v29, 16
    %v32 = vadd.s32 %v29, 24
    %v33 = vadd.s32 %v29, 32
    %v34 = vadd.s32 %v29, 40
    %v35 = vadd.s32 %v29, 48
    %v36 = vadd.s32 %v29, 56
    %v37 = vadd.s32 %v29, 64
    %v38 = vadd.s32 %v29, 72
    %v39 = vadd.s32 %v29, 80
    %v40 = vadd.s32 %v29, 88
    %v41 = vadd.s32 %v29, 96
    %v42 = vadd.s32 %v29, 104
    %v43 = vadd.s32 %v29, 112
    %v44 = vadd.s32 %v29, 120
    %v45 = vcvt.s32.f32 %v29
    %v46 = vcvt.s32.f32 %v30
    %v47 = vcvt.s32.f32 %v31
    %v48 = vcvt.s32.f32 %v32
    %v49 = vcvt.s32.f32 %v33
    %v50 = vcvt.s32.f32 %v34
    %v51 = vcvt.s32.f32 %v35
    %v52 = vcvt.s32.f32 %v36
    %v53 = vcvt.s32.f32 %v37
    %v54 = vcvt.s32.f32 %v38
    %v55 = vcvt.s32.f32 %v39
    %v56 = vcvt.s32.f32 %v40
    %v57 = vcvt.s32.f32 %v41
    %v58 = vcvt.s32.f32 %v42
    %v59 = vcvt.s32.f32 %v43
    %v60 = vcvt.s32.f32 %v44
    %v61 = vlaneseq
    %v62 = vshrl.u32 %v61, 7
    %v63 = vsub.s32 0, %v62
    %v64 = vrot.slane %v21, %v63
    %v65 = vmul.f32 %v45, %v64
    %v66 = vmul.f32 %v46, %v64
    %v67 = vmul.f32 %v47, %v64
    %v68 = vmul.f32 %v48, %v64
    %v69 = vmul.f32 %v49, %v64
    %v70 = vmul.f32 %v50, %v64
    %v71 = vmul.f32 %v51, %v64
    %v72 = vmul.f32 %v52, %v64
    %v73 = vmul.f32 %v53, %v64
    %v74 = vmul.f32 %v54, %v64
    %v75 = vmul.f32 %v55, %v64
    %v76 = vmul.f32 %v56, %v64
    %v77 = vmul.f32 %v57, %v64
    %v78 = vmul.f32 %v58, %v64
    %v79 = vmul.f32 %v59, %v64
    %v80 = vmul.f32 %v60, %v64
    %v81 = vlaneseq
    %v82 = vshrl.u32 %v81, 7
    %v83 = vsub.s32 0, %v82
    %v84 = vrot.slane %v27, %v83
    %v85 = vadd.f32 %v65, %v84
    %v86 = vadd.f32 %v66, %v84
    %v87 = vadd.f32 %v67, %v84
    %v88 = vadd.f32 %v68, %v84
    %v89 = vadd.f32 %v69, %v84
    %v90 = vadd.f32 %v70, %v84
    %v91 = vadd.f32 %v71, %v84
    %v92 = vadd.f32 %v72, %v84
    %v93 = vadd.f32 %v73, %v84
    %v94 = vadd.f32 %v74, %v84
    %v95 = vadd.f32 %v75, %v84
    %v96 = vadd.f32 %v76, %v84
    %v97 = vadd.f32 %v77, %v84
    %v98 = vadd.f32 %v78, %v84
    %v99 = vadd.f32 %v79, %v84
    %v100 = vadd.f32 %v80, %v84
    %v101 = vand.u32 2147483647, %v85
    %vm102 = vcmp.le.f32.partialorder %v101, 0.7853982
    %vm103 = vcmp.lt.s32.totalorder %v85, 0
    %v104 = vand.u32 %v85, 2139095040
    %v105 = vshrl.u32 %v104, 23
    %v106 = vsub.s32 %v105, 127
    %v107 = vand.u32 2147483647, %v85
    %v108 = vand.u32 %v107, 8388607
    %v109 = vor.u32 %v108, 8388608
    %v110 = vsub.s32 0, %v109
    %v111 = vadd.s32 %v106, 1
    %vm112 = vcmp.gt.s32.totalorder %v111, 0
    %v113 = vsel %vm112, %v111, 0
    %v114 = vshrl.u32 %v113, 5
    %v115 = vand.u32 %v113, 31
    %v116 = vsub.s32 32, %v115
    %v117 = vshrl.u32 683565275, %v116
    %v118 = vshll.u32 683565275, %v115
    %v119 = vshrl.u32 2475754826, %v116
    %v120 = vor.u32 %v118, %v119
    %v121 = vshll.u32 2475754826, %v115
    %v122 = vshrl.u32 2131351028, %v116
    %v123 = vor.u32 %v121, %v122
    %v124 = vshll.u32 2131351028, %v115
    %v125 = vshrl.u32 2102212464, %v116
    %v126 = vor.u32 %v124, %v125
    %v127 = vshll.u32 2102212464, %v115
    %v128 = vshrl.u32 920167782, %v116
    %v129 = vor.u32 %v127, %v128
    %v130 = vshll.u32 920167782, %v115
    %v131 = vshrl.u32 1326507024, %v116
    %v132 = vor.u32 %v130, %v131
    %vm133 = vcmp.lt.s32.totalorder %v114, 1
    %vm134 = vcmp.lt.s32.totalorder %v114, 2
    %vm135 = vcmp.lt.s32.totalorder %v114, 3
    %vm136 = vcmp.lt.s32.totalorder %v114, 4
    %v137 = vsel %vm133, %v117, %v120
    %v138 = vsel %vm136, %v126, 2102212464
    %v139 = vsel %vm135, %v123, %v138
    %v140 = vsel %vm134, %v137, %v139
    %v141 = vsel %vm133, %v120, %v123
    %v142 = vsel %vm136, %v129, 920167782
    %v143 = vsel %vm135, %v126, %v142
    %v144 = vsel %vm134, %v141, %v143
    %v145 = vsel %vm133, %v123, %v126
    %v146 = vsel %vm136, %v132, 1326507024
    %v147 = vsel %vm135, %v129, %v146
    %v148 = vsel %vm134, %v145, %v147
    %v149 = vshll.u32 %v109, 8
    %v150 = vmul.u32.u64.compose %v149, %v148
    %v151 = vextract.low.u32 %v150
    %v152 = vextract.high.u32 %v150
    %v153 = vmul.u32.u64.compose %v149, %v144
    %v154 = vextract.low.u32 %v153
    %v155 = vextract.high.u32 %v153
    %v156 = vmul.u32 %v149, %v140
    %v157 = vadd.s32 %v152, %v154
    %vm158 = vc.u32 %v152, %v154
    %v159 = vadd.s32 %v155, 1
    %v160 = vsel %vm158, %v159, %v155
    %v161 = vadd.s32 %v156, %v160
    %v162 = vadd.s32 %v161, 536870912
    %v163 = vshrl.u32 %v162, 30
    %v164 = vshll.u32 %v163, 30
    %v165 = vsub.s32 %v161, %v164
    %vm166 = vcmp.lt.s32.totalorder %v165, 0
    %v167 = vsub.s32 0, %v165
    %v168 = vsel %vm166, %v167, %v165
    %v169 = vclz %v168
    %v170 = vsub.s32 %v169, 2
    %vm171 = vcmp.gt.s32.totalorder 0, %v170
    %v172 = vsel %vm171, 0, %v170
    %v173 = vsub.s32 32, %v172
    %v174 = vshll.u32 %v165, %v172
    %v175 = vshrl.u32 %v157, %v173
    %v176 = vor.u32 %v174, %v175
    %v177 = vsub.s32 4294967266, %v172
    %v178 = vadd.s32 %v177, 127
    %v179 = vshll.u32 %v178, 23
    %v180 = vor.u32 4788187, %v179
    %v181 = vand.u32 2147483647, %v180
    %v183 = vcvt.s32.f32 %v176
    %v184 = vmul.f32 %v183, %v181
    %v185 = vxor.u32 %v184, 2147483648
    %v186 = vsel %vm103, %v185, %v184
    %v187 = vsub.s32 4, %v163
    %v188 = vsel %vm103, %v187, %v163
    %v189 = vsel %vm102, %v85, %v186
    %v190 = vsel %vm102, 0, %v188
    %v191 = vcosq.f32.pop %v189
    %v192 = vsinq.f32.pop %v189
    %vm193 = vweird.f32 %v85
    %v194 = vadd.s32 %v190, 3
    %v195 = vand.u32 %v194, 3
    %vm196 = vcmp.lt.s32.totalorder %v195, 2
    %vm197 = vcmp.eq.s32.totalorder %v195, 0
    %v198 = vxor.u32 %v192, 2147483648
    %v199 = vsel %vm197, %v191, %v198
    %vm200 = vcmp.eq.s32.totalorder %v195, 2
    %v201 = vxor.u32 %v191, 2147483648
    %v202 = vsel %vm200, %v201, %v192
    %v203 = vsel %vm196, %v199, %v202
    %v204 = vsel %vm193, nan, %v203
    %v205 = vand.u32 2147483647, %v86
    %vm206 = vcmp.le.f32.partialorder %v205, 0.7853982
    %vm207 = vcmp.lt.s32.totalorder %v86, 0
    %v208 = vand.u32 %v86, 2139095040
    %v209 = vshrl.u32 %v208, 23
    %v210 = vsub.s32 %v209, 127
    %v211 = vand.u32 2147483647, %v86
    %v212 = vand.u32 %v211, 8388607
    %v213 = vor.u32 %v212, 8388608
    %v214 = vsub.s32 0, %v213
    %v215 = vadd.s32 %v210, 1
    %vm216 = vcmp.gt.s32.totalorder %v215, 0
    %v217 = vsel %vm216, %v215, 0
    %v218 = vshrl.u32 %v217, 5
    %v219 = vand.u32 %v217, 31
    %v220 = vsub.s32 32, %v219
    %v221 = vshrl.u32 683565275, %v220
    %v222 = vshll.u32 683565275, %v219
    %v223 = vshrl.u32 2475754826, %v220
    %v224 = vor.u32 %v222, %v223
    %v225 = vshll.u32 2475754826, %v219
    %v226 = vshrl.u32 2131351028, %v220
    %v227 = vor.u32 %v225, %v226
    %v228 = vshll.u32 2131351028, %v219
    %v229 = vshrl.u32 2102212464, %v220
    %v230 = vor.u32 %v228, %v229
    %v231 = vshll.u32 2102212464, %v219
    %v232 = vshrl.u32 920167782, %v220
    %v233 = vor.u32 %v231, %v232
    %v234 = vshll.u32 920167782, %v219
    %v235 = vshrl.u32 1326507024, %v220
    %v236 = vor.u32 %v234, %v235
    %vm237 = vcmp.lt.s32.totalorder %v218, 1
    %vm238 = vcmp.lt.s32.totalorder %v218, 2
    %vm239 = vcmp.lt.s32.totalorder %v218, 3
    %vm240 = vcmp.lt.s32.totalorder %v218, 4
    %v241 = vsel %vm237, %v221, %v224
    %v242 = vsel %vm240, %v230, 2102212464
    %v243 = vsel %vm239, %v227, %v242
    %v244 = vsel %vm238, %v241, %v243
    %v245 = vsel %vm237, %v224, %v227
    %v246 = vsel %vm240, %v233, 920167782
    %v247 = vsel %vm239, %v230, %v246
    %v248 = vsel %vm238, %v245, %v247
    %v249 = vsel %vm237, %v227, %v230
    %v250 = vsel %vm240, %v236, 1326507024
    %v251 = vsel %vm239, %v233, %v250
    %v252 = vsel %vm238, %v249, %v251
    %v253 = vshll.u32 %v213, 8
    %v254 = vmul.u32.u64.compose %v253, %v252
    %v255 = vextract.low.u32 %v254
    %v256 = vextract.high.u32 %v254
    %v257 = vmul.u32.u64.compose %v253, %v248
    %v258 = vextract.low.u32 %v257
    %v259 = vextract.high.u32 %v257
    %v260 = vmul.u32 %v253, %v244
    %v261 = vadd.s32 %v256, %v258
    %vm262 = vc.u32 %v256, %v258
    %v263 = vadd.s32 %v259, 1
    %v264 = vsel %vm262, %v263, %v259
    %v265 = vadd.s32 %v260, %v264
    %v266 = vadd.s32 %v265, 536870912
    %v267 = vshrl.u32 %v266, 30
    %v268 = vshll.u32 %v267, 30
    %v269 = vsub.s32 %v265, %v268
    %vm270 = vcmp.lt.s32.totalorder %v269, 0
    %v271 = vsub.s32 0, %v269
    %v272 = vsel %vm270, %v271, %v269
    %v273 = vclz %v272
    %v274 = vsub.s32 %v273, 2
    %vm275 = vcmp.gt.s32.totalorder 0, %v274
    %v276 = vsel %vm275, 0, %v274
    %v277 = vsub.s32 32, %v276
    %v278 = vshll.u32 %v269, %v276
    %v279 = vshrl.u32 %v261, %v277
    %v280 = vor.u32 %v278, %v279
    %v281 = vsub.s32 4294967266, %v276
    %v282 = vadd.s32 %v281, 127
    %v283 = vshll.u32 %v282, 23
    %v284 = vor.u32 4788187, %v283
    %v285 = vand.u32 2147483647, %v284
    %v287 = vcvt.s32.f32 %v280
    %v288 = vmul.f32 %v287, %v285
    %v289 = vxor.u32 %v288, 2147483648
    %v290 = vsel %vm207, %v289, %v288
    %v291 = vsub.s32 4, %v267
    %v292 = vsel %vm207, %v291, %v267
    %v293 = vsel %vm206, %v86, %v290
    %v294 = vsel %vm206, 0, %v292
    %v295 = vcosq.f32.pop %v293
    %v296 = vsinq.f32.pop %v293
    %vm297 = vweird.f32 %v86
    %v298 = vadd.s32 %v294, 3
    %v299 = vand.u32 %v298, 3
    %vm300 = vcmp.lt.s32.totalorder %v299, 2
    %vm301 = vcmp.eq.s32.totalorder %v299, 0
    %v302 = vxor.u32 %v296, 2147483648
    %v303 = vsel %vm301, %v295, %v302
    %vm304 = vcmp.eq.s32.totalorder %v299, 2
    %v305 = vxor.u32 %v295, 2147483648
    %v306 = vsel %vm304, %v305, %v296
    %v307 = vsel %vm300, %v303, %v306
    %v308 = vsel %vm297, nan, %v307
    %v309 = vand.u32 2147483647, %v87
    %vm310 = vcmp.le.f32.partialorder %v309, 0.7853982
    %vm311 = vcmp.lt.s32.totalorder %v87, 0
    %v312 = vand.u32 %v87, 2139095040
    %v313 = vshrl.u32 %v312, 23
    %v314 = vsub.s32 %v313, 127
    %v315 = vand.u32 2147483647, %v87
    %v316 = vand.u32 %v315, 8388607
    %v317 = vor.u32 %v316, 8388608
    %v318 = vsub.s32 0, %v317
    %v319 = vadd.s32 %v314, 1
    %vm320 = vcmp.gt.s32.totalorder %v319, 0
    %v321 = vsel %vm320, %v319, 0
    %v322 = vshrl.u32 %v321, 5
    %v323 = vand.u32 %v321, 31
    %v324 = vsub.s32 32, %v323
    %v325 = vshrl.u32 683565275, %v324
    %v326 = vshll.u32 683565275, %v323
    %v327 = vshrl.u32 2475754826, %v324
    %v328 = vor.u32 %v326, %v327
    %v329 = vshll.u32 2475754826, %v323
    %v330 = vshrl.u32 2131351028, %v324
    %v331 = vor.u32 %v329, %v330
    %v332 = vshll.u32 2131351028, %v323
    %v333 = vshrl.u32 2102212464, %v324
    %v334 = vor.u32 %v332, %v333
    %v335 = vshll.u32 2102212464, %v323
    %v336 = vshrl.u32 920167782, %v324
    %v337 = vor.u32 %v335, %v336
    %v338 = vshll.u32 920167782, %v323
    %v339 = vshrl.u32 1326507024, %v324
    %v340 = vor.u32 %v338, %v339
    %vm341 = vcmp.lt.s32.totalorder %v322, 1
    %vm342 = vcmp.lt.s32.totalorder %v322, 2
    %vm343 = vcmp.lt.s32.totalorder %v322, 3
    %vm344 = vcmp.lt.s32.totalorder %v322, 4
    %v345 = vsel %vm341, %v325, %v328
    %v346 = vsel %vm344, %v334, 2102212464
    %v347 = vsel %vm343, %v331, %v346
    %v348 = vsel %vm342, %v345, %v347
    %v349 = vsel %vm341, %v328, %v331
    %v350 = vsel %vm344, %v337, 920167782
    %v351 = vsel %vm343, %v334, %v350
    %v352 = vsel %vm342, %v349, %v351
    %v353 = vsel %vm341, %v331, %v334
    %v354 = vsel %vm344, %v340, 1326507024
    %v355 = vsel %vm343, %v337, %v354
    %v356 = vsel %vm342, %v353, %v355
    %v357 = vshll.u32 %v317, 8
    %v358 = vmul.u32.u64.compose %v357, %v356
    %v359 = vextract.low.u32 %v358
    %v360 = vextract.high.u32 %v358
    %v361 = vmul.u32.u64.compose %v357, %v352
    %v362 = vextract.low.u32 %v361
    %v363 = vextract.high.u32 %v361
    %v364 = vmul.u32 %v357, %v348
    %v365 = vadd.s32 %v360, %v362
    %vm366 = vc.u32 %v360, %v362
    %v367 = vadd.s32 %v363, 1
    %v368 = vsel %vm366, %v367, %v363
    %v369 = vadd.s32 %v364, %v368
    %v370 = vadd.s32 %v369, 536870912
    %v371 = vshrl.u32 %v370, 30
    %v372 = vshll.u32 %v371, 30
    %v373 = vsub.s32 %v369, %v372
    %vm374 = vcmp.lt.s32.totalorder %v373, 0
    %v375 = vsub.s32 0, %v373
    %v376 = vsel %vm374, %v375, %v373
    %v377 = vclz %v376
    %v378 = vsub.s32 %v377, 2
    %vm379 = vcmp.gt.s32.totalorder 0, %v378
    %v380 = vsel %vm379, 0, %v378
    %v381 = vsub.s32 32, %v380
    %v382 = vshll.u32 %v373, %v380
    %v383 = vshrl.u32 %v365, %v381
    %v384 = vor.u32 %v382, %v383
    %v385 = vsub.s32 4294967266, %v380
    %v386 = vadd.s32 %v385, 127
    %v387 = vshll.u32 %v386, 23
    %v388 = vor.u32 4788187, %v387
    %v389 = vand.u32 2147483647, %v388
    %v391 = vcvt.s32.f32 %v384
    %v392 = vmul.f32 %v391, %v389
    %v393 = vxor.u32 %v392, 2147483648
    %v394 = vsel %vm311, %v393, %v392
    %v395 = vsub.s32 4, %v371
    %v396 = vsel %vm311, %v395, %v371
    %v397 = vsel %vm310, %v87, %v394
    %v398 = vsel %vm310, 0, %v396
    %v399 = vcosq.f32.pop %v397
    %v400 = vsinq.f32.pop %v397
    %vm401 = vweird.f32 %v87
    %v402 = vadd.s32 %v398, 3
    %v403 = vand.u32 %v402, 3
    %vm404 = vcmp.lt.s32.totalorder %v403, 2
    %vm405 = vcmp.eq.s32.totalorder %v403, 0
    %v406 = vxor.u32 %v400, 2147483648
    %v407 = vsel %vm405, %v399, %v406
    %vm408 = vcmp.eq.s32.totalorder %v403, 2
    %v409 = vxor.u32 %v399, 2147483648
    %v410 = vsel %vm408, %v409, %v400
    %v411 = vsel %vm404, %v407, %v410
    %v412 = vsel %vm401, nan, %v411
    %v413 = vand.u32 2147483647, %v88
    %vm414 = vcmp.le.f32.partialorder %v413, 0.7853982
    %vm415 = vcmp.lt.s32.totalorder %v88, 0
    %v416 = vand.u32 %v88, 2139095040
    %v417 = vshrl.u32 %v416, 23
    %v418 = vsub.s32 %v417, 127
    %v419 = vand.u32 2147483647, %v88
    %v420 = vand.u32 %v419, 8388607
    %v421 = vor.u32 %v420, 8388608
    %v422 = vsub.s32 0, %v421
    %v423 = vadd.s32 %v418, 1
    %vm424 = vcmp.gt.s32.totalorder %v423, 0
    %v425 = vsel %vm424, %v423, 0
    %v426 = vshrl.u32 %v425, 5
    %v427 = vand.u32 %v425, 31
    %v428 = vsub.s32 32, %v427
    %v429 = vshrl.u32 683565275, %v428
    %v430 = vshll.u32 683565275, %v427
    %v431 = vshrl.u32 2475754826, %v428
    %v432 = vor.u32 %v430, %v431
    %v433 = vshll.u32 2475754826, %v427
    %v434 = vshrl.u32 2131351028, %v428
    %v435 = vor.u32 %v433, %v434
    %v436 = vshll.u32 2131351028, %v427
    %v437 = vshrl.u32 2102212464, %v428
    %v438 = vor.u32 %v436, %v437
    %v439 = vshll.u32 2102212464, %v427
    %v440 = vshrl.u32 920167782, %v428
    %v441 = vor.u32 %v439, %v440
    %v442 = vshll.u32 920167782, %v427
    %v443 = vshrl.u32 1326507024, %v428
    %v444 = vor.u32 %v442, %v443
    %vm445 = vcmp.lt.s32.totalorder %v426, 1
    %vm446 = vcmp.lt.s32.totalorder %v426, 2
    %vm447 = vcmp.lt.s32.totalorder %v426, 3
    %vm448 = vcmp.lt.s32.totalorder %v426, 4
    %v449 = vsel %vm445, %v429, %v432
    %v450 = vsel %vm448, %v438, 2102212464
    %v451 = vsel %vm447, %v435, %v450
    %v452 = vsel %vm446, %v449, %v451
    %v453 = vsel %vm445, %v432, %v435
    %v454 = vsel %vm448, %v441, 920167782
    %v455 = vsel %vm447, %v438, %v454
    %v456 = vsel %vm446, %v453, %v455
    %v457 = vsel %vm445, %v435, %v438
    %v458 = vsel %vm448, %v444, 1326507024
    %v459 = vsel %vm447, %v441, %v458
    %v460 = vsel %vm446, %v457, %v459
    %v461 = vshll.u32 %v421, 8
    %v462 = vmul.u32.u64.compose %v461, %v460
    %v463 = vextract.low.u32 %v462
    %v464 = vextract.high.u32 %v462
    %v465 = vmul.u32.u64.compose %v461, %v456
    %v466 = vextract.low.u32 %v465
    %v467 = vextract.high.u32 %v465
    %v468 = vmul.u32 %v461, %v452
    %v469 = vadd.s32 %v464, %v466
    %vm470 = vc.u32 %v464, %v466
    %v471 = vadd.s32 %v467, 1
    %v472 = vsel %vm470, %v471, %v467
    %v473 = vadd.s32 %v468, %v472
    %v474 = vadd.s32 %v473, 536870912
    %v475 = vshrl.u32 %v474, 30
    %v476 = vshll.u32 %v475, 30
    %v477 = vsub.s32 %v473, %v476
    %vm478 = vcmp.lt.s32.totalorder %v477, 0
    %v479 = vsub.s32 0, %v477
    %v480 = vsel %vm478, %v479, %v477
    %v481 = vclz %v480
    %v482 = vsub.s32 %v481, 2
    %vm483 = vcmp.gt.s32.totalorder 0, %v482
    %v484 = vsel %vm483, 0, %v482
    %v485 = vsub.s32 32, %v484
    %v486 = vshll.u32 %v477, %v484
    %v487 = vshrl.u32 %v469, %v485
    %v488 = vor.u32 %v486, %v487
    %v489 = vsub.s32 4294967266, %v484
    %v490 = vadd.s32 %v489, 127
    %v491 = vshll.u32 %v490, 23
    %v492 = vor.u32 4788187, %v491
    %v493 = vand.u32 2147483647, %v492
    %v495 = vcvt.s32.f32 %v488
    %v496 = vmul.f32 %v495, %v493
    %v497 = vxor.u32 %v496, 2147483648
    %v498 = vsel %vm415, %v497, %v496
    %v499 = vsub.s32 4, %v475
    %v500 = vsel %vm415, %v499, %v475
    %v501 = vsel %vm414, %v88, %v498
    %v502 = vsel %vm414, 0, %v500
    %v503 = vcosq.f32.pop %v501
    %v504 = vsinq.f32.pop %v501
    %vm505 = vweird.f32 %v88
    %v506 = vadd.s32 %v502, 3
    %v507 = vand.u32 %v506, 3
    %vm508 = vcmp.lt.s32.totalorder %v507, 2
    %vm509 = vcmp.eq.s32.totalorder %v507, 0
    %v510 = vxor.u32 %v504, 2147483648
    %v511 = vsel %vm509, %v503, %v510
    %vm512 = vcmp.eq.s32.totalorder %v507, 2
    %v513 = vxor.u32 %v503, 2147483648
    %v514 = vsel %vm512, %v513, %v504
    %v515 = vsel %vm508, %v511, %v514
    %v516 = vsel %vm505, nan, %v515
    %v517 = vand.u32 2147483647, %v89
    %vm518 = vcmp.le.f32.partialorder %v517, 0.7853982
    %vm519 = vcmp.lt.s32.totalorder %v89, 0
    %v520 = vand.u32 %v89, 2139095040
    %v521 = vshrl.u32 %v520, 23
    %v522 = vsub.s32 %v521, 127
    %v523 = vand.u32 2147483647, %v89
    %v524 = vand.u32 %v523, 8388607
    %v525 = vor.u32 %v524, 8388608
    %v526 = vsub.s32 0, %v525
    %v527 = vadd.s32 %v522, 1
    %vm528 = vcmp.gt.s32.totalorder %v527, 0
    %v529 = vsel %vm528, %v527, 0
    %v530 = vshrl.u32 %v529, 5
    %v531 = vand.u32 %v529, 31
    %v532 = vsub.s32 32, %v531
    %v533 = vshrl.u32 683565275, %v532
    %v534 = vshll.u32 683565275, %v531
    %v535 = vshrl.u32 2475754826, %v532
    %v536 = vor.u32 %v534, %v535
    %v537 = vshll.u32 2475754826, %v531
    %v538 = vshrl.u32 2131351028, %v532
    %v539 = vor.u32 %v537, %v538
    %v540 = vshll.u32 2131351028, %v531
    %v541 = vshrl.u32 2102212464, %v532
    %v542 = vor.u32 %v540, %v541
    %v543 = vshll.u32 2102212464, %v531
    %v544 = vshrl.u32 920167782, %v532
    %v545 = vor.u32 %v543, %v544
    %v546 = vshll.u32 920167782, %v531
    %v547 = vshrl.u32 1326507024, %v532
    %v548 = vor.u32 %v546, %v547
    %vm549 = vcmp.lt.s32.totalorder %v530, 1
    %vm550 = vcmp.lt.s32.totalorder %v530, 2
    %vm551 = vcmp.lt.s32.totalorder %v530, 3
    %vm552 = vcmp.lt.s32.totalorder %v530, 4
    %v553 = vsel %vm549, %v533, %v536
    %v554 = vsel %vm552, %v542, 2102212464
    %v555 = vsel %vm551, %v539, %v554
    %v556 = vsel %vm550, %v553, %v555
    %v557 = vsel %vm549, %v536, %v539
    %v558 = vsel %vm552, %v545, 920167782
    %v559 = vsel %vm551, %v542, %v558
    %v560 = vsel %vm550, %v557, %v559
    %v561 = vsel %vm549, %v539, %v542
    %v562 = vsel %vm552, %v548, 1326507024
    %v563 = vsel %vm551, %v545, %v562
    %v564 = vsel %vm550, %v561, %v563
    %v565 = vshll.u32 %v525, 8
    %v566 = vmul.u32.u64.compose %v565, %v564
    %v567 = vextract.low.u32 %v566
    %v568 = vextract.high.u32 %v566
    %v569 = vmul.u32.u64.compose %v565, %v560
    %v570 = vextract.low.u32 %v569
    %v571 = vextract.high.u32 %v569
    %v572 = vmul.u32 %v565, %v556
    %v573 = vadd.s32 %v568, %v570
    %vm574 = vc.u32 %v568, %v570
    %v575 = vadd.s32 %v571, 1
    %v576 = vsel %vm574, %v575, %v571
    %v577 = vadd.s32 %v572, %v576
    %v578 = vadd.s32 %v577, 536870912
    %v579 = vshrl.u32 %v578, 30
    %v580 = vshll.u32 %v579, 30
    %v581 = vsub.s32 %v577, %v580
    %vm582 = vcmp.lt.s32.totalorder %v581, 0
    %v583 = vsub.s32 0, %v581
    %v584 = vsel %vm582, %v583, %v581
    %v585 = vclz %v584
    %v586 = vsub.s32 %v585, 2
    %vm587 = vcmp.gt.s32.totalorder 0, %v586
    %v588 = vsel %vm587, 0, %v586
    %v589 = vsub.s32 32, %v588
    %v590 = vshll.u32 %v581, %v588
    %v591 = vshrl.u32 %v573, %v589
    %v592 = vor.u32 %v590, %v591
    %v593 = vsub.s32 4294967266, %v588
    %v594 = vadd.s32 %v593, 127
    %v595 = vshll.u32 %v594, 23
    %v596 = vor.u32 4788187, %v595
    %v597 = vand.u32 2147483647, %v596
    %v599 = vcvt.s32.f32 %v592
    %v600 = vmul.f32 %v599, %v597
    %v601 = vxor.u32 %v600, 2147483648
    %v602 = vsel %vm519, %v601, %v600
    %v603 = vsub.s32 4, %v579
    %v604 = vsel %vm519, %v603, %v579
    %v605 = vsel %vm518, %v89, %v602
    %v606 = vsel %vm518, 0, %v604
    %v607 = vcosq.f32.pop %v605
    %v608 = vsinq.f32.pop %v605
    %vm609 = vweird.f32 %v89
    %v610 = vadd.s32 %v606, 3
    %v611 = vand.u32 %v610, 3
    %vm612 = vcmp.lt.s32.totalorder %v611, 2
    %vm613 = vcmp.eq.s32.totalorder %v611, 0
    %v614 = vxor.u32 %v608, 2147483648
    %v615 = vsel %vm613, %v607, %v614
    %vm616 = vcmp.eq.s32.totalorder %v611, 2
    %v617 = vxor.u32 %v607, 2147483648
    %v618 = vsel %vm616, %v617, %v608
    %v619 = vsel %vm612, %v615, %v618
    %v620 = vsel %vm609, nan, %v619
    %v621 = vand.u32 2147483647, %v90
    %vm622 = vcmp.le.f32.partialorder %v621, 0.7853982
    %vm623 = vcmp.lt.s32.totalorder %v90, 0
    %v624 = vand.u32 %v90, 2139095040
    %v625 = vshrl.u32 %v624, 23
    %v626 = vsub.s32 %v625, 127
    %v627 = vand.u32 2147483647, %v90
    %v628 = vand.u32 %v627, 8388607
    %v629 = vor.u32 %v628, 8388608
    %v630 = vsub.s32 0, %v629
    %v631 = vadd.s32 %v626, 1
    %vm632 = vcmp.gt.s32.totalorder %v631, 0
    %v633 = vsel %vm632, %v631, 0
    %v634 = vshrl.u32 %v633, 5
    %v635 = vand.u32 %v633, 31
    %v636 = vsub.s32 32, %v635
    %v637 = vshrl.u32 683565275, %v636
    %v638 = vshll.u32 683565275, %v635
    %v639 = vshrl.u32 2475754826, %v636
    %v640 = vor.u32 %v638, %v639
    %v641 = vshll.u32 2475754826, %v635
    %v642 = vshrl.u32 2131351028, %v636
    %v643 = vor.u32 %v641, %v642
    %v644 = vshll.u32 2131351028, %v635
    %v645 = vshrl.u32 2102212464, %v636
    %v646 = vor.u32 %v644, %v645
    %v647 = vshll.u32 2102212464, %v635
    %v648 = vshrl.u32 920167782, %v636
    %v649 = vor.u32 %v647, %v648
    %v650 = vshll.u32 920167782, %v635
    %v651 = vshrl.u32 1326507024, %v636
    %v652 = vor.u32 %v650, %v651
    %vm653 = vcmp.lt.s32.totalorder %v634, 1
    %vm654 = vcmp.lt.s32.totalorder %v634, 2
    %vm655 = vcmp.lt.s32.totalorder %v634, 3
    %vm656 = vcmp.lt.s32.totalorder %v634, 4
    %v657 = vsel %vm653, %v637, %v640
    %v658 = vsel %vm656, %v646, 2102212464
    %v659 = vsel %vm655, %v643, %v658
    %v660 = vsel %vm654, %v657, %v659
    %v661 = vsel %vm653, %v640, %v643
    %v662 = vsel %vm656, %v649, 920167782
    %v663 = vsel %vm655, %v646, %v662
    %v664 = vsel %vm654, %v661, %v663
    %v665 = vsel %vm653, %v643, %v646
    %v666 = vsel %vm656, %v652, 1326507024
    %v667 = vsel %vm655, %v649, %v666
    %v668 = vsel %vm654, %v665, %v667
    %v669 = vshll.u32 %v629, 8
    %v670 = vmul.u32.u64.compose %v669, %v668
    %v671 = vextract.low.u32 %v670
    %v672 = vextract.high.u32 %v670
    %v673 = vmul.u32.u64.compose %v669, %v664
    %v674 = vextract.low.u32 %v673
    %v675 = vextract.high.u32 %v673
    %v676 = vmul.u32 %v669, %v660
    %v677 = vadd.s32 %v672, %v674
    %vm678 = vc.u32 %v672, %v674
    %v679 = vadd.s32 %v675, 1
    %v680 = vsel %vm678, %v679, %v675
    %v681 = vadd.s32 %v676, %v680
    %v682 = vadd.s32 %v681, 536870912
    %v683 = vshrl.u32 %v682, 30
    %v684 = vshll.u32 %v683, 30
    %v685 = vsub.s32 %v681, %v684
    %vm686 = vcmp.lt.s32.totalorder %v685, 0
    %v687 = vsub.s32 0, %v685
    %v688 = vsel %vm686, %v687, %v685
    %v689 = vclz %v688
    %v690 = vsub.s32 %v689, 2
    %vm691 = vcmp.gt.s32.totalorder 0, %v690
    %v692 = vsel %vm691, 0, %v690
    %v693 = vsub.s32 32, %v692
    %v694 = vshll.u32 %v685, %v692
    %v695 = vshrl.u32 %v677, %v693
    %v696 = vor.u32 %v694, %v695
    %v697 = vsub.s32 4294967266, %v692
    %v698 = vadd.s32 %v697, 127
    %v699 = vshll.u32 %v698, 23
    %v700 = vor.u32 4788187, %v699
    %v701 = vand.u32 2147483647, %v700
    %v703 = vcvt.s32.f32 %v696
    %v704 = vmul.f32 %v703, %v701
    %v705 = vxor.u32 %v704, 2147483648
    %v706 = vsel %vm623, %v705, %v704
    %v707 = vsub.s32 4, %v683
    %v708 = vsel %vm623, %v707, %v683
    %v709 = vsel %vm622, %v90, %v706
    %v710 = vsel %vm622, 0, %v708
    %v711 = vcosq.f32.pop %v709
    %v712 = vsinq.f32.pop %v709
    %vm713 = vweird.f32 %v90
    %v714 = vadd.s32 %v710, 3
    %v715 = vand.u32 %v714, 3
    %vm716 = vcmp.lt.s32.totalorder %v715, 2
    %vm717 = vcmp.eq.s32.totalorder %v715, 0
    %v718 = vxor.u32 %v712, 2147483648
    %v719 = vsel %vm717, %v711, %v718
    %vm720 = vcmp.eq.s32.totalorder %v715, 2
    %v721 = vxor.u32 %v711, 2147483648
    %v722 = vsel %vm720, %v721, %v712
    %v723 = vsel %vm716, %v719, %v722
    %v724 = vsel %vm713, nan, %v723
    %v725 = vand.u32 2147483647, %v91
    %vm726 = vcmp.le.f32.partialorder %v725, 0.7853982
    %vm727 = vcmp.lt.s32.totalorder %v91, 0
    %v728 = vand.u32 %v91, 2139095040
    %v729 = vshrl.u32 %v728, 23
    %v730 = vsub.s32 %v729, 127
    %v731 = vand.u32 2147483647, %v91
    %v732 = vand.u32 %v731, 8388607
    %v733 = vor.u32 %v732, 8388608
    %v734 = vsub.s32 0, %v733
    %v735 = vadd.s32 %v730, 1
    %vm736 = vcmp.gt.s32.totalorder %v735, 0
    %v737 = vsel %vm736, %v735, 0
    %v738 = vshrl.u32 %v737, 5
    %v739 = vand.u32 %v737, 31
    %v740 = vsub.s32 32, %v739
    %v741 = vshrl.u32 683565275, %v740
    %v742 = vshll.u32 683565275, %v739
    %v743 = vshrl.u32 2475754826, %v740
    %v744 = vor.u32 %v742, %v743
    %v745 = vshll.u32 2475754826, %v739
    %v746 = vshrl.u32 2131351028, %v740
    %v747 = vor.u32 %v745, %v746
    %v748 = vshll.u32 2131351028, %v739
    %v749 = vshrl.u32 2102212464, %v740
    %v750 = vor.u32 %v748, %v749
    %v751 = vshll.u32 2102212464, %v739
    %v752 = vshrl.u32 920167782, %v740
    %v753 = vor.u32 %v751, %v752
    %v754 = vshll.u32 920167782, %v739
    %v755 = vshrl.u32 1326507024, %v740
    %v756 = vor.u32 %v754, %v755
    %vm757 = vcmp.lt.s32.totalorder %v738, 1
    %vm758 = vcmp.lt.s32.totalorder %v738, 2
    %vm759 = vcmp.lt.s32.totalorder %v738, 3
    %vm760 = vcmp.lt.s32.totalorder %v738, 4
    %v761 = vsel %vm757, %v741, %v744
    %v762 = vsel %vm760, %v750, 2102212464
    %v763 = vsel %vm759, %v747, %v762
    %v764 = vsel %vm758, %v761, %v763
    %v765 = vsel %vm757, %v744, %v747
    %v766 = vsel %vm760, %v753, 920167782
    %v767 = vsel %vm759, %v750, %v766
    %v768 = vsel %vm758, %v765, %v767
    %v769 = vsel %vm757, %v747, %v750
    %v770 = vsel %vm760, %v756, 1326507024
    %v771 = vsel %vm759, %v753, %v770
    %v772 = vsel %vm758, %v769, %v771
    %v773 = vshll.u32 %v733, 8
    %v774 = vmul.u32.u64.compose %v773, %v772
    %v775 = vextract.low.u32 %v774
    %v776 = vextract.high.u32 %v774
    %v777 = vmul.u32.u64.compose %v773, %v768
    %v778 = vextract.low.u32 %v777
    %v779 = vextract.high.u32 %v777
    %v780 = vmul.u32 %v773, %v764
    %v781 = vadd.s32 %v776, %v778
    %vm782 = vc.u32 %v776, %v778
    %v783 = vadd.s32 %v779, 1
    %v784 = vsel %vm782, %v783, %v779
    %v785 = vadd.s32 %v780, %v784
    %v786 = vadd.s32 %v785, 536870912
    %v787 = vshrl.u32 %v786, 30
    %v788 = vshll.u32 %v787, 30
    %v789 = vsub.s32 %v785, %v788
    %vm790 = vcmp.lt.s32.totalorder %v789, 0
    %v791 = vsub.s32 0, %v789
    %v792 = vsel %vm790, %v791, %v789
    %v793 = vclz %v792
    %v794 = vsub.s32 %v793, 2
    %vm795 = vcmp.gt.s32.totalorder 0, %v794
    %v796 = vsel %vm795, 0, %v794
    %v797 = vsub.s32 32, %v796
    %v798 = vshll.u32 %v789, %v796
    %v799 = vshrl.u32 %v781, %v797
    %v800 = vor.u32 %v798, %v799
    %v801 = vsub.s32 4294967266, %v796
    %v802 = vadd.s32 %v801, 127
    %v803 = vshll.u32 %v802, 23
    %v804 = vor.u32 4788187, %v803
    %v805 = vand.u32 2147483647, %v804
    %v807 = vcvt.s32.f32 %v800
    %v808 = vmul.f32 %v807, %v805
    %v809 = vxor.u32 %v808, 2147483648
    %v810 = vsel %vm727, %v809, %v808
    %v811 = vsub.s32 4, %v787
    %v812 = vsel %vm727, %v811, %v787
    %v813 = vsel %vm726, %v91, %v810
    %v814 = vsel %vm726, 0, %v812
    %v815 = vcosq.f32.pop %v813
    %v816 = vsinq.f32.pop %v813
    %vm817 = vweird.f32 %v91
    %v818 = vadd.s32 %v814, 3
    %v819 = vand.u32 %v818, 3
    %vm820 = vcmp.lt.s32.totalorder %v819, 2
    %vm821 = vcmp.eq.s32.totalorder %v819, 0
    %v822 = vxor.u32 %v816, 2147483648
    %v823 = vsel %vm821, %v815, %v822
    %vm824 = vcmp.eq.s32.totalorder %v819, 2
    %v825 = vxor.u32 %v815, 2147483648
    %v826 = vsel %vm824, %v825, %v816
    %v827 = vsel %vm820, %v823, %v826
    %v828 = vsel %vm817, nan, %v827
    %v829 = vand.u32 2147483647, %v92
    %vm830 = vcmp.le.f32.partialorder %v829, 0.7853982
    %vm831 = vcmp.lt.s32.totalorder %v92, 0
    %v832 = vand.u32 %v92, 2139095040
    %v833 = vshrl.u32 %v832, 23
    %v834 = vsub.s32 %v833, 127
    %v835 = vand.u32 2147483647, %v92
    %v836 = vand.u32 %v835, 8388607
    %v837 = vor.u32 %v836, 8388608
    %v838 = vsub.s32 0, %v837
    %v839 = vadd.s32 %v834, 1
    %vm840 = vcmp.gt.s32.totalorder %v839, 0
    %v841 = vsel %vm840, %v839, 0
    %v842 = vshrl.u32 %v841, 5
    %v843 = vand.u32 %v841, 31
    %v844 = vsub.s32 32, %v843
    %v845 = vshrl.u32 683565275, %v844
    %v846 = vshll.u32 683565275, %v843
    %v847 = vshrl.u32 2475754826, %v844
    %v848 = vor.u32 %v846, %v847
    %v849 = vshll.u32 2475754826, %v843
    %v850 = vshrl.u32 2131351028, %v844
    %v851 = vor.u32 %v849, %v850
    %v852 = vshll.u32 2131351028, %v843
    %v853 = vshrl.u32 2102212464, %v844
    %v854 = vor.u32 %v852, %v853
    %v855 = vshll.u32 2102212464, %v843
    %v856 = vshrl.u32 920167782, %v844
    %v857 = vor.u32 %v855, %v856
    %v858 = vshll.u32 920167782, %v843
    %v859 = vshrl.u32 1326507024, %v844
    %v860 = vor.u32 %v858, %v859
    %vm861 = vcmp.lt.s32.totalorder %v842, 1
    %vm862 = vcmp.lt.s32.totalorder %v842, 2
    %vm863 = vcmp.lt.s32.totalorder %v842, 3
    %vm864 = vcmp.lt.s32.totalorder %v842, 4
    %v865 = vsel %vm861, %v845, %v848
    %v866 = vsel %vm864, %v854, 2102212464
    %v867 = vsel %vm863, %v851, %v866
    %v868 = vsel %vm862, %v865, %v867
    %v869 = vsel %vm861, %v848, %v851
    %v870 = vsel %vm864, %v857, 920167782
    %v871 = vsel %vm863, %v854, %v870
    %v872 = vsel %vm862, %v869, %v871
    %v873 = vsel %vm861, %v851, %v854
    %v874 = vsel %vm864, %v860, 1326507024
    %v875 = vsel %vm863, %v857, %v874
    %v876 = vsel %vm862, %v873, %v875
    %v877 = vshll.u32 %v837, 8
    %v878 = vmul.u32.u64.compose %v877, %v876
    %v879 = vextract.low.u32 %v878
    %v880 = vextract.high.u32 %v878
    %v881 = vmul.u32.u64.compose %v877, %v872
    %v882 = vextract.low.u32 %v881
    %v883 = vextract.high.u32 %v881
    %v884 = vmul.u32 %v877, %v868
    %v885 = vadd.s32 %v880, %v882
    %vm886 = vc.u32 %v880, %v882
    %v887 = vadd.s32 %v883, 1
    %v888 = vsel %vm886, %v887, %v883
    %v889 = vadd.s32 %v884, %v888
    %v890 = vadd.s32 %v889, 536870912
    %v891 = vshrl.u32 %v890, 30
    %v892 = vshll.u32 %v891, 30
    %v893 = vsub.s32 %v889, %v892
    %vm894 = vcmp.lt.s32.totalorder %v893, 0
    %v895 = vsub.s32 0, %v893
    %v896 = vsel %vm894, %v895, %v893
    %v897 = vclz %v896
    %v898 = vsub.s32 %v897, 2
    %vm899 = vcmp.gt.s32.totalorder 0, %v898
    %v900 = vsel %vm899, 0, %v898
    %v901 = vsub.s32 32, %v900
    %v902 = vshll.u32 %v893, %v900
    %v903 = vshrl.u32 %v885, %v901
    %v904 = vor.u32 %v902, %v903
    %v905 = vsub.s32 4294967266, %v900
    %v906 = vadd.s32 %v905, 127
    %v907 = vshll.u32 %v906, 23
    %v908 = vor.u32 4788187, %v907
    %v909 = vand.u32 2147483647, %v908
    %v911 = vcvt.s32.f32 %v904
    %v912 = vmul.f32 %v911, %v909
    %v913 = vxor.u32 %v912, 2147483648
    %v914 = vsel %vm831, %v913, %v912
    %v915 = vsub.s32 4, %v891
    %v916 = vsel %vm831, %v915, %v891
    %v917 = vsel %vm830, %v92, %v914
    %v918 = vsel %vm830, 0, %v916
    %v919 = vcosq.f32.pop %v917
    %v920 = vsinq.f32.pop %v917
    %vm921 = vweird.f32 %v92
    %v922 = vadd.s32 %v918, 3
    %v923 = vand.u32 %v922, 3
    %vm924 = vcmp.lt.s32.totalorder %v923, 2
    %vm925 = vcmp.eq.s32.totalorder %v923, 0
    %v926 = vxor.u32 %v920, 2147483648
    %v927 = vsel %vm925, %v919, %v926
    %vm928 = vcmp.eq.s32.totalorder %v923, 2
    %v929 = vxor.u32 %v919, 2147483648
    %v930 = vsel %vm928, %v929, %v920
    %v931 = vsel %vm924, %v927, %v930
    %v932 = vsel %vm921, nan, %v931
    %v933 = vand.u32 2147483647, %v93
    %vm934 = vcmp.le.f32.partialorder %v933, 0.7853982
    %vm935 = vcmp.lt.s32.totalorder %v93, 0
    %v936 = vand.u32 %v93, 2139095040
    %v937 = vshrl.u32 %v936, 23
    %v938 = vsub.s32 %v937, 127
    %v939 = vand.u32 2147483647, %v93
    %v940 = vand.u32 %v939, 8388607
    %v941 = vor.u32 %v940, 8388608
    %v942 = vsub.s32 0, %v941
    %v943 = vadd.s32 %v938, 1
    %vm944 = vcmp.gt.s32.totalorder %v943, 0
    %v945 = vsel %vm944, %v943, 0
    %v946 = vshrl.u32 %v945, 5
    %v947 = vand.u32 %v945, 31
    %v948 = vsub.s32 32, %v947
    %v949 = vshrl.u32 683565275, %v948
    %v950 = vshll.u32 683565275, %v947
    %v951 = vshrl.u32 2475754826, %v948
    %v952 = vor.u32 %v950, %v951
    %v953 = vshll.u32 2475754826, %v947
    %v954 = vshrl.u32 2131351028, %v948
    %v955 = vor.u32 %v953, %v954
    %v956 = vshll.u32 2131351028, %v947
    %v957 = vshrl.u32 2102212464, %v948
    %v958 = vor.u32 %v956, %v957
    %v959 = vshll.u32 2102212464, %v947
    %v960 = vshrl.u32 920167782, %v948
    %v961 = vor.u32 %v959, %v960
    %v962 = vshll.u32 920167782, %v947
    %v963 = vshrl.u32 1326507024, %v948
    %v964 = vor.u32 %v962, %v963
    %vm965 = vcmp.lt.s32.totalorder %v946, 1
    %vm966 = vcmp.lt.s32.totalorder %v946, 2
    %vm967 = vcmp.lt.s32.totalorder %v946, 3
    %vm968 = vcmp.lt.s32.totalorder %v946, 4
    %v969 = vsel %vm965, %v949, %v952
    %v970 = vsel %vm968, %v958, 2102212464
    %v971 = vsel %vm967, %v955, %v970
    %v972 = vsel %vm966, %v969, %v971
    %v973 = vsel %vm965, %v952, %v955
    %v974 = vsel %vm968, %v961, 920167782
    %v975 = vsel %vm967, %v958, %v974
    %v976 = vsel %vm966, %v973, %v975
    %v977 = vsel %vm965, %v955, %v958
    %v978 = vsel %vm968, %v964, 1326507024
    %v979 = vsel %vm967, %v961, %v978
    %v980 = vsel %vm966, %v977, %v979
    %v981 = vshll.u32 %v941, 8
    %v982 = vmul.u32.u64.compose %v981, %v980
    %v983 = vextract.low.u32 %v982
    %v984 = vextract.high.u32 %v982
    %v985 = vmul.u32.u64.compose %v981, %v976
    %v986 = vextract.low.u32 %v985
    %v987 = vextract.high.u32 %v985
    %v988 = vmul.u32 %v981, %v972
    %v989 = vadd.s32 %v984, %v986
    %vm990 = vc.u32 %v984, %v986
    %v991 = vadd.s32 %v987, 1
    %v992 = vsel %vm990, %v991, %v987
    %v993 = vadd.s32 %v988, %v992
    %v994 = vadd.s32 %v993, 536870912
    %v995 = vshrl.u32 %v994, 30
    %v996 = vshll.u32 %v995, 30
    %v997 = vsub.s32 %v993, %v996
    %vm998 = vcmp.lt.s32.totalorder %v997, 0
    %v999 = vsub.s32 0, %v997
    %v1000 = vsel %vm998, %v999, %v997
    %v1001 = vclz %v1000
    %v1002 = vsub.s32 %v1001, 2
    %vm1003 = vcmp.gt.s32.totalorder 0, %v1002
    %v1004 = vsel %vm1003, 0, %v1002
    %v1005 = vsub.s32 32, %v1004
    %v1006 = vshll.u32 %v997, %v1004
    %v1007 = vshrl.u32 %v989, %v1005
    %v1008 = vor.u32 %v1006, %v1007
    %v1009 = vsub.s32 4294967266, %v1004
    %v1010 = vadd.s32 %v1009, 127
    %v1011 = vshll.u32 %v1010, 23
    %v1012 = vor.u32 4788187, %v1011
    %v1013 = vand.u32 2147483647, %v1012
    %v1015 = vcvt.s32.f32 %v1008
    %v1016 = vmul.f32 %v1015, %v1013
    %v1017 = vxor.u32 %v1016, 2147483648
    %v1018 = vsel %vm935, %v1017, %v1016
    %v1019 = vsub.s32 4, %v995
    %v1020 = vsel %vm935, %v1019, %v995
    %v1021 = vsel %vm934, %v93, %v1018
    %v1022 = vsel %vm934, 0, %v1020
    %v1023 = vcosq.f32.pop %v1021
    %v1024 = vsinq.f32.pop %v1021
    %vm1025 = vweird.f32 %v93
    %v1026 = vadd.s32 %v1022, 3
    %v1027 = vand.u32 %v1026, 3
    %vm1028 = vcmp.lt.s32.totalorder %v1027, 2
    %vm1029 = vcmp.eq.s32.totalorder %v1027, 0
    %v1030 = vxor.u32 %v1024, 2147483648
    %v1031 = vsel %vm1029, %v1023, %v1030
    %vm1032 = vcmp.eq.s32.totalorder %v1027, 2
    %v1033 = vxor.u32 %v1023, 2147483648
    %v1034 = vsel %vm1032, %v1033, %v1024
    %v1035 = vsel %vm1028, %v1031, %v1034
    %v1036 = vsel %vm1025, nan, %v1035
    %v1037 = vand.u32 2147483647, %v94
    %vm1038 = vcmp.le.f32.partialorder %v1037, 0.7853982
    %vm1039 = vcmp.lt.s32.totalorder %v94, 0
    %v1040 = vand.u32 %v94, 2139095040
    %v1041 = vshrl.u32 %v1040, 23
    %v1042 = vsub.s32 %v1041, 127
    %v1043 = vand.u32 2147483647, %v94
    %v1044 = vand.u32 %v1043, 8388607
    %v1045 = vor.u32 %v1044, 8388608
    %v1046 = vsub.s32 0, %v1045
    %v1047 = vadd.s32 %v1042, 1
    %vm1048 = vcmp.gt.s32.totalorder %v1047, 0
    %v1049 = vsel %vm1048, %v1047, 0
    %v1050 = vshrl.u32 %v1049, 5
    %v1051 = vand.u32 %v1049, 31
    %v1052 = vsub.s32 32, %v1051
    %v1053 = vshrl.u32 683565275, %v1052
    %v1054 = vshll.u32 683565275, %v1051
    %v1055 = vshrl.u32 2475754826, %v1052
    %v1056 = vor.u32 %v1054, %v1055
    %v1057 = vshll.u32 2475754826, %v1051
    %v1058 = vshrl.u32 2131351028, %v1052
    %v1059 = vor.u32 %v1057, %v1058
    %v1060 = vshll.u32 2131351028, %v1051
    %v1061 = vshrl.u32 2102212464, %v1052
    %v1062 = vor.u32 %v1060, %v1061
    %v1063 = vshll.u32 2102212464, %v1051
    %v1064 = vshrl.u32 920167782, %v1052
    %v1065 = vor.u32 %v1063, %v1064
    %v1066 = vshll.u32 920167782, %v1051
    %v1067 = vshrl.u32 1326507024, %v1052
    %v1068 = vor.u32 %v1066, %v1067
    %vm1069 = vcmp.lt.s32.totalorder %v1050, 1
    %vm1070 = vcmp.lt.s32.totalorder %v1050, 2
    %vm1071 = vcmp.lt.s32.totalorder %v1050, 3
    %vm1072 = vcmp.lt.s32.totalorder %v1050, 4
    %v1073 = vsel %vm1069, %v1053, %v1056
    %v1074 = vsel %vm1072, %v1062, 2102212464
    %v1075 = vsel %vm1071, %v1059, %v1074
    %v1076 = vsel %vm1070, %v1073, %v1075
    %v1077 = vsel %vm1069, %v1056, %v1059
    %v1078 = vsel %vm1072, %v1065, 920167782
    %v1079 = vsel %vm1071, %v1062, %v1078
    %v1080 = vsel %vm1070, %v1077, %v1079
    %v1081 = vsel %vm1069, %v1059, %v1062
    %v1082 = vsel %vm1072, %v1068, 1326507024
    %v1083 = vsel %vm1071, %v1065, %v1082
    %v1084 = vsel %vm1070, %v1081, %v1083
    %v1085 = vshll.u32 %v1045, 8
    %v1086 = vmul.u32.u64.compose %v1085, %v1084
    %v1087 = vextract.low.u32 %v1086
    %v1088 = vextract.high.u32 %v1086
    %v1089 = vmul.u32.u64.compose %v1085, %v1080
    %v1090 = vextract.low.u32 %v1089
    %v1091 = vextract.high.u32 %v1089
    %v1092 = vmul.u32 %v1085, %v1076
    %v1093 = vadd.s32 %v1088, %v1090
    %vm1094 = vc.u32 %v1088, %v1090
    %v1095 = vadd.s32 %v1091, 1
    %v1096 = vsel %vm1094, %v1095, %v1091
    %v1097 = vadd.s32 %v1092, %v1096
    %v1098 = vadd.s32 %v1097, 536870912
    %v1099 = vshrl.u32 %v1098, 30
    %v1100 = vshll.u32 %v1099, 30
    %v1101 = vsub.s32 %v1097, %v1100
    %vm1102 = vcmp.lt.s32.totalorder %v1101, 0
    %v1103 = vsub.s32 0, %v1101
    %v1104 = vsel %vm1102, %v1103, %v1101
    %v1105 = vclz %v1104
    %v1106 = vsub.s32 %v1105, 2
    %vm1107 = vcmp.gt.s32.totalorder 0, %v1106
    %v1108 = vsel %vm1107, 0, %v1106
    %v1109 = vsub.s32 32, %v1108
    %v1110 = vshll.u32 %v1101, %v1108
    %v1111 = vshrl.u32 %v1093, %v1109
    %v1112 = vor.u32 %v1110, %v1111
    %v1113 = vsub.s32 4294967266, %v1108
    %v1114 = vadd.s32 %v1113, 127
    %v1115 = vshll.u32 %v1114, 23
    %v1116 = vor.u32 4788187, %v1115
    %v1117 = vand.u32 2147483647, %v1116
    %v1119 = vcvt.s32.f32 %v1112
    %v1120 = vmul.f32 %v1119, %v1117
    %v1121 = vxor.u32 %v1120, 2147483648
    %v1122 = vsel %vm1039, %v1121, %v1120
    %v1123 = vsub.s32 4, %v1099
    %v1124 = vsel %vm1039, %v1123, %v1099
    %v1125 = vsel %vm1038, %v94, %v1122
    %v1126 = vsel %vm1038, 0, %v1124
    %v1127 = vcosq.f32.pop %v1125
    %v1128 = vsinq.f32.pop %v1125
    %vm1129 = vweird.f32 %v94
    %v1130 = vadd.s32 %v1126, 3
    %v1131 = vand.u32 %v1130, 3
    %vm1132 = vcmp.lt.s32.totalorder %v1131, 2
    %vm1133 = vcmp.eq.s32.totalorder %v1131, 0
    %v1134 = vxor.u32 %v1128, 2147483648
    %v1135 = vsel %vm1133, %v1127, %v1134
    %vm1136 = vcmp.eq.s32.totalorder %v1131, 2
    %v1137 = vxor.u32 %v1127, 2147483648
    %v1138 = vsel %vm1136, %v1137, %v1128
    %v1139 = vsel %vm1132, %v1135, %v1138
    %v1140 = vsel %vm1129, nan, %v1139
    %v1141 = vand.u32 2147483647, %v95
    %vm1142 = vcmp.le.f32.partialorder %v1141, 0.7853982
    %vm1143 = vcmp.lt.s32.totalorder %v95, 0
    %v1144 = vand.u32 %v95, 2139095040
    %v1145 = vshrl.u32 %v1144, 23
    %v1146 = vsub.s32 %v1145, 127
    %v1147 = vand.u32 2147483647, %v95
    %v1148 = vand.u32 %v1147, 8388607
    %v1149 = vor.u32 %v1148, 8388608
    %v1150 = vsub.s32 0, %v1149
    %v1151 = vadd.s32 %v1146, 1
    %vm1152 = vcmp.gt.s32.totalorder %v1151, 0
    %v1153 = vsel %vm1152, %v1151, 0
    %v1154 = vshrl.u32 %v1153, 5
    %v1155 = vand.u32 %v1153, 31
    %v1156 = vsub.s32 32, %v1155
    %v1157 = vshrl.u32 683565275, %v1156
    %v1158 = vshll.u32 683565275, %v1155
    %v1159 = vshrl.u32 2475754826, %v1156
    %v1160 = vor.u32 %v1158, %v1159
    %v1161 = vshll.u32 2475754826, %v1155
    %v1162 = vshrl.u32 2131351028, %v1156
    %v1163 = vor.u32 %v1161, %v1162
    %v1164 = vshll.u32 2131351028, %v1155
    %v1165 = vshrl.u32 2102212464, %v1156
    %v1166 = vor.u32 %v1164, %v1165
    %v1167 = vshll.u32 2102212464, %v1155
    %v1168 = vshrl.u32 920167782, %v1156
    %v1169 = vor.u32 %v1167, %v1168
    %v1170 = vshll.u32 920167782, %v1155
    %v1171 = vshrl.u32 1326507024, %v1156
    %v1172 = vor.u32 %v1170, %v1171
    %vm1173 = vcmp.lt.s32.totalorder %v1154, 1
    %vm1174 = vcmp.lt.s32.totalorder %v1154, 2
    %vm1175 = vcmp.lt.s32.totalorder %v1154, 3
    %vm1176 = vcmp.lt.s32.totalorder %v1154, 4
    %v1177 = vsel %vm1173, %v1157, %v1160
    %v1178 = vsel %vm1176, %v1166, 2102212464
    %v1179 = vsel %vm1175, %v1163, %v1178
    %v1180 = vsel %vm1174, %v1177, %v1179
    %v1181 = vsel %vm1173, %v1160, %v1163
    %v1182 = vsel %vm1176, %v1169, 920167782
    %v1183 = vsel %vm1175, %v1166, %v1182
    %v1184 = vsel %vm1174, %v1181, %v1183
    %v1185 = vsel %vm1173, %v1163, %v1166
    %v1186 = vsel %vm1176, %v1172, 1326507024
    %v1187 = vsel %vm1175, %v1169, %v1186
    %v1188 = vsel %vm1174, %v1185, %v1187
    %v1189 = vshll.u32 %v1149, 8
    %v1190 = vmul.u32.u64.compose %v1189, %v1188
    %v1191 = vextract.low.u32 %v1190
    %v1192 = vextract.high.u32 %v1190
    %v1193 = vmul.u32.u64.compose %v1189, %v1184
    %v1194 = vextract.low.u32 %v1193
    %v1195 = vextract.high.u32 %v1193
    %v1196 = vmul.u32 %v1189, %v1180
    %v1197 = vadd.s32 %v1192, %v1194
    %vm1198 = vc.u32 %v1192, %v1194
    %v1199 = vadd.s32 %v1195, 1
    %v1200 = vsel %vm1198, %v1199, %v1195
    %v1201 = vadd.s32 %v1196, %v1200
    %v1202 = vadd.s32 %v1201, 536870912
    %v1203 = vshrl.u32 %v1202, 30
    %v1204 = vshll.u32 %v1203, 30
    %v1205 = vsub.s32 %v1201, %v1204
    %vm1206 = vcmp.lt.s32.totalorder %v1205, 0
    %v1207 = vsub.s32 0, %v1205
    %v1208 = vsel %vm1206, %v1207, %v1205
    %v1209 = vclz %v1208
    %v1210 = vsub.s32 %v1209, 2
    %vm1211 = vcmp.gt.s32.totalorder 0, %v1210
    %v1212 = vsel %vm1211, 0, %v1210
    %v1213 = vsub.s32 32, %v1212
    %v1214 = vshll.u32 %v1205, %v1212
    %v1215 = vshrl.u32 %v1197, %v1213
    %v1216 = vor.u32 %v1214, %v1215
    %v1217 = vsub.s32 4294967266, %v1212
    %v1218 = vadd.s32 %v1217, 127
    %v1219 = vshll.u32 %v1218, 23
    %v1220 = vor.u32 4788187, %v1219
    %v1221 = vand.u32 2147483647, %v1220
    %v1223 = vcvt.s32.f32 %v1216
    %v1224 = vmul.f32 %v1223, %v1221
    %v1225 = vxor.u32 %v1224, 2147483648
    %v1226 = vsel %vm1143, %v1225, %v1224
    %v1227 = vsub.s32 4, %v1203
    %v1228 = vsel %vm1143, %v1227, %v1203
    %v1229 = vsel %vm1142, %v95, %v1226
    %v1230 = vsel %vm1142, 0, %v1228
    %v1231 = vcosq.f32.pop %v1229
    %v1232 = vsinq.f32.pop %v1229
    %vm1233 = vweird.f32 %v95
    %v1234 = vadd.s32 %v1230, 3
    %v1235 = vand.u32 %v1234, 3
    %vm1236 = vcmp.lt.s32.totalorder %v1235, 2
    %vm1237 = vcmp.eq.s32.totalorder %v1235, 0
    %v1238 = vxor.u32 %v1232, 2147483648
    %v1239 = vsel %vm1237, %v1231, %v1238
    %vm1240 = vcmp.eq.s32.totalorder %v1235, 2
    %v1241 = vxor.u32 %v1231, 2147483648
    %v1242 = vsel %vm1240, %v1241, %v1232
    %v1243 = vsel %vm1236, %v1239, %v1242
    %v1244 = vsel %vm1233, nan, %v1243
    %v1245 = vand.u32 2147483647, %v96
    %vm1246 = vcmp.le.f32.partialorder %v1245, 0.7853982
    %vm1247 = vcmp.lt.s32.totalorder %v96, 0
    %v1248 = vand.u32 %v96, 2139095040
    %v1249 = vshrl.u32 %v1248, 23
    %v1250 = vsub.s32 %v1249, 127
    %v1251 = vand.u32 2147483647, %v96
    %v1252 = vand.u32 %v1251, 8388607
    %v1253 = vor.u32 %v1252, 8388608
    %v1254 = vsub.s32 0, %v1253
    %v1255 = vadd.s32 %v1250, 1
    %vm1256 = vcmp.gt.s32.totalorder %v1255, 0
    %v1257 = vsel %vm1256, %v1255, 0
    %v1258 = vshrl.u32 %v1257, 5
    %v1259 = vand.u32 %v1257, 31
    %v1260 = vsub.s32 32, %v1259
    %v1261 = vshrl.u32 683565275, %v1260
    %v1262 = vshll.u32 683565275, %v1259
    %v1263 = vshrl.u32 2475754826, %v1260
    %v1264 = vor.u32 %v1262, %v1263
    %v1265 = vshll.u32 2475754826, %v1259
    %v1266 = vshrl.u32 2131351028, %v1260
    %v1267 = vor.u32 %v1265, %v1266
    %v1268 = vshll.u32 2131351028, %v1259
    %v1269 = vshrl.u32 2102212464, %v1260
    %v1270 = vor.u32 %v1268, %v1269
    %v1271 = vshll.u32 2102212464, %v1259
    %v1272 = vshrl.u32 920167782, %v1260
    %v1273 = vor.u32 %v1271, %v1272
    %v1274 = vshll.u32 920167782, %v1259
    %v1275 = vshrl.u32 1326507024, %v1260
    %v1276 = vor.u32 %v1274, %v1275
    %vm1277 = vcmp.lt.s32.totalorder %v1258, 1
    %vm1278 = vcmp.lt.s32.totalorder %v1258, 2
    %vm1279 = vcmp.lt.s32.totalorder %v1258, 3
    %vm1280 = vcmp.lt.s32.totalorder %v1258, 4
    %v1281 = vsel %vm1277, %v1261, %v1264
    %v1282 = vsel %vm1280, %v1270, 2102212464
    %v1283 = vsel %vm1279, %v1267, %v1282
    %v1284 = vsel %vm1278, %v1281, %v1283
    %v1285 = vsel %vm1277, %v1264, %v1267
    %v1286 = vsel %vm1280, %v1273, 920167782
    %v1287 = vsel %vm1279, %v1270, %v1286
    %v1288 = vsel %vm1278, %v1285, %v1287
    %v1289 = vsel %vm1277, %v1267, %v1270
    %v1290 = vsel %vm1280, %v1276, 1326507024
    %v1291 = vsel %vm1279, %v1273, %v1290
    %v1292 = vsel %vm1278, %v1289, %v1291
    %v1293 = vshll.u32 %v1253, 8
    %v1294 = vmul.u32.u64.compose %v1293, %v1292
    %v1295 = vextract.low.u32 %v1294
    %v1296 = vextract.high.u32 %v1294
    %v1297 = vmul.u32.u64.compose %v1293, %v1288
    %v1298 = vextract.low.u32 %v1297
    %v1299 = vextract.high.u32 %v1297
    %v1300 = vmul.u32 %v1293, %v1284
    %v1301 = vadd.s32 %v1296, %v1298
    %vm1302 = vc.u32 %v1296, %v1298
    %v1303 = vadd.s32 %v1299, 1
    %v1304 = vsel %vm1302, %v1303, %v1299
    %v1305 = vadd.s32 %v1300, %v1304
    %v1306 = vadd.s32 %v1305, 536870912
    %v1307 = vshrl.u32 %v1306, 30
    %v1308 = vshll.u32 %v1307, 30
    %v1309 = vsub.s32 %v1305, %v1308
    %vm1310 = vcmp.lt.s32.totalorder %v1309, 0
    %v1311 = vsub.s32 0, %v1309
    %v1312 = vsel %vm1310, %v1311, %v1309
    %v1313 = vclz %v1312
    %v1314 = vsub.s32 %v1313, 2
    %vm1315 = vcmp.gt.s32.totalorder 0, %v1314
    %v1316 = vsel %vm1315, 0, %v1314
    %v1317 = vsub.s32 32, %v1316
    %v1318 = vshll.u32 %v1309, %v1316
    %v1319 = vshrl.u32 %v1301, %v1317
    %v1320 = vor.u32 %v1318, %v1319
    %v1321 = vsub.s32 4294967266, %v1316
    %v1322 = vadd.s32 %v1321, 127
    %v1323 = vshll.u32 %v1322, 23
    %v1324 = vor.u32 4788187, %v1323
    %v1325 = vand.u32 2147483647, %v1324
    %v1327 = vcvt.s32.f32 %v1320
    %v1328 = vmul.f32 %v1327, %v1325
    %v1329 = vxor.u32 %v1328, 2147483648
    %v1330 = vsel %vm1247, %v1329, %v1328
    %v1331 = vsub.s32 4, %v1307
    %v1332 = vsel %vm1247, %v1331, %v1307
    %v1333 = vsel %vm1246, %v96, %v1330
    %v1334 = vsel %vm1246, 0, %v1332
    %v1335 = vcosq.f32.pop %v1333
    %v1336 = vsinq.f32.pop %v1333
    %vm1337 = vweird.f32 %v96
    %v1338 = vadd.s32 %v1334, 3
    %v1339 = vand.u32 %v1338, 3
    %vm1340 = vcmp.lt.s32.totalorder %v1339, 2
    %vm1341 = vcmp.eq.s32.totalorder %v1339, 0
    %v1342 = vxor.u32 %v1336, 2147483648
    %v1343 = vsel %vm1341, %v1335, %v1342
    %vm1344 = vcmp.eq.s32.totalorder %v1339, 2
    %v1345 = vxor.u32 %v1335, 2147483648
    %v1346 = vsel %vm1344, %v1345, %v1336
    %v1347 = vsel %vm1340, %v1343, %v1346
    %v1348 = vsel %vm1337, nan, %v1347
    %v1349 = vand.u32 2147483647, %v97
    %vm1350 = vcmp.le.f32.partialorder %v1349, 0.7853982
    %vm1351 = vcmp.lt.s32.totalorder %v97, 0
    %v1352 = vand.u32 %v97, 2139095040
    %v1353 = vshrl.u32 %v1352, 23
    %v1354 = vsub.s32 %v1353, 127
    %v1355 = vand.u32 2147483647, %v97
    %v1356 = vand.u32 %v1355, 8388607
    %v1357 = vor.u32 %v1356, 8388608
    %v1358 = vsub.s32 0, %v1357
    %v1359 = vadd.s32 %v1354, 1
    %vm1360 = vcmp.gt.s32.totalorder %v1359, 0
    %v1361 = vsel %vm1360, %v1359, 0
    %v1362 = vshrl.u32 %v1361, 5
    %v1363 = vand.u32 %v1361, 31
    %v1364 = vsub.s32 32, %v1363
    %v1365 = vshrl.u32 683565275, %v1364
    %v1366 = vshll.u32 683565275, %v1363
    %v1367 = vshrl.u32 2475754826, %v1364
    %v1368 = vor.u32 %v1366, %v1367
    %v1369 = vshll.u32 2475754826, %v1363
    %v1370 = vshrl.u32 2131351028, %v1364
    %v1371 = vor.u32 %v1369, %v1370
    %v1372 = vshll.u32 2131351028, %v1363
    %v1373 = vshrl.u32 2102212464, %v1364
    %v1374 = vor.u32 %v1372, %v1373
    %v1375 = vshll.u32 2102212464, %v1363
    %v1376 = vshrl.u32 920167782, %v1364
    %v1377 = vor.u32 %v1375, %v1376
    %v1378 = vshll.u32 920167782, %v1363
    %v1379 = vshrl.u32 1326507024, %v1364
    %v1380 = vor.u32 %v1378, %v1379
    %vm1381 = vcmp.lt.s32.totalorder %v1362, 1
    %vm1382 = vcmp.lt.s32.totalorder %v1362, 2
    %vm1383 = vcmp.lt.s32.totalorder %v1362, 3
    %vm1384 = vcmp.lt.s32.totalorder %v1362, 4
    %v1385 = vsel %vm1381, %v1365, %v1368
    %v1386 = vsel %vm1384, %v1374, 2102212464
    %v1387 = vsel %vm1383, %v1371, %v1386
    %v1388 = vsel %vm1382, %v1385, %v1387
    %v1389 = vsel %vm1381, %v1368, %v1371
    %v1390 = vsel %vm1384, %v1377, 920167782
    %v1391 = vsel %vm1383, %v1374, %v1390
    %v1392 = vsel %vm1382, %v1389, %v1391
    %v1393 = vsel %vm1381, %v1371, %v1374
    %v1394 = vsel %vm1384, %v1380, 1326507024
    %v1395 = vsel %vm1383, %v1377, %v1394
    %v1396 = vsel %vm1382, %v1393, %v1395
    %v1397 = vshll.u32 %v1357, 8
    %v1398 = vmul.u32.u64.compose %v1397, %v1396
    %v1399 = vextract.low.u32 %v1398
    %v1400 = vextract.high.u32 %v1398
    %v1401 = vmul.u32.u64.compose %v1397, %v1392
    %v1402 = vextract.low.u32 %v1401
    %v1403 = vextract.high.u32 %v1401
    %v1404 = vmul.u32 %v1397, %v1388
    %v1405 = vadd.s32 %v1400, %v1402
    %vm1406 = vc.u32 %v1400, %v1402
    %v1407 = vadd.s32 %v1403, 1
    %v1408 = vsel %vm1406, %v1407, %v1403
    %v1409 = vadd.s32 %v1404, %v1408
    %v1410 = vadd.s32 %v1409, 536870912
    %v1411 = vshrl.u32 %v1410, 30
    %v1412 = vshll.u32 %v1411, 30
    %v1413 = vsub.s32 %v1409, %v1412
    %vm1414 = vcmp.lt.s32.totalorder %v1413, 0
    %v1415 = vsub.s32 0, %v1413
    %v1416 = vsel %vm1414, %v1415, %v1413
    %v1417 = vclz %v1416
    %v1418 = vsub.s32 %v1417, 2
    %vm1419 = vcmp.gt.s32.totalorder 0, %v1418
    %v1420 = vsel %vm1419, 0, %v1418
    %v1421 = vsub.s32 32, %v1420
    %v1422 = vshll.u32 %v1413, %v1420
    %v1423 = vshrl.u32 %v1405, %v1421
    %v1424 = vor.u32 %v1422, %v1423
    %v1425 = vsub.s32 4294967266, %v1420
    %v1426 = vadd.s32 %v1425, 127
    %v1427 = vshll.u32 %v1426, 23
    %v1428 = vor.u32 4788187, %v1427
    %v1429 = vand.u32 2147483647, %v1428
    %v1431 = vcvt.s32.f32 %v1424
    %v1432 = vmul.f32 %v1431, %v1429
    %v1433 = vxor.u32 %v1432, 2147483648
    %v1434 = vsel %vm1351, %v1433, %v1432
    %v1435 = vsub.s32 4, %v1411
    %v1436 = vsel %vm1351, %v1435, %v1411
    %v1437 = vsel %vm1350, %v97, %v1434
    %v1438 = vsel %vm1350, 0, %v1436
    %v1439 = vcosq.f32.pop %v1437
    %v1440 = vsinq.f32.pop %v1437
    %vm1441 = vweird.f32 %v97
    %v1442 = vadd.s32 %v1438, 3
    %v1443 = vand.u32 %v1442, 3
    %vm1444 = vcmp.lt.s32.totalorder %v1443, 2
    %vm1445 = vcmp.eq.s32.totalorder %v1443, 0
    %v1446 = vxor.u32 %v1440, 2147483648
    %v1447 = vsel %vm1445, %v1439, %v1446
    %vm1448 = vcmp.eq.s32.totalorder %v1443, 2
    %v1449 = vxor.u32 %v1439, 2147483648
    %v1450 = vsel %vm1448, %v1449, %v1440
    %v1451 = vsel %vm1444, %v1447, %v1450
    %v1452 = vsel %vm1441, nan, %v1451
    %v1453 = vand.u32 2147483647, %v98
    %vm1454 = vcmp.le.f32.partialorder %v1453, 0.7853982
    %vm1455 = vcmp.lt.s32.totalorder %v98, 0
    %v1456 = vand.u32 %v98, 2139095040
    %v1457 = vshrl.u32 %v1456, 23
    %v1458 = vsub.s32 %v1457, 127
    %v1459 = vand.u32 2147483647, %v98
    %v1460 = vand.u32 %v1459, 8388607
    %v1461 = vor.u32 %v1460, 8388608
    %v1462 = vsub.s32 0, %v1461
    %v1463 = vadd.s32 %v1458, 1
    %vm1464 = vcmp.gt.s32.totalorder %v1463, 0
    %v1465 = vsel %vm1464, %v1463, 0
    %v1466 = vshrl.u32 %v1465, 5
    %v1467 = vand.u32 %v1465, 31
    %v1468 = vsub.s32 32, %v1467
    %v1469 = vshrl.u32 683565275, %v1468
    %v1470 = vshll.u32 683565275, %v1467
    %v1471 = vshrl.u32 2475754826, %v1468
    %v1472 = vor.u32 %v1470, %v1471
    %v1473 = vshll.u32 2475754826, %v1467
    %v1474 = vshrl.u32 2131351028, %v1468
    %v1475 = vor.u32 %v1473, %v1474
    %v1476 = vshll.u32 2131351028, %v1467
    %v1477 = vshrl.u32 2102212464, %v1468
    %v1478 = vor.u32 %v1476, %v1477
    %v1479 = vshll.u32 2102212464, %v1467
    %v1480 = vshrl.u32 920167782, %v1468
    %v1481 = vor.u32 %v1479, %v1480
    %v1482 = vshll.u32 920167782, %v1467
    %v1483 = vshrl.u32 1326507024, %v1468
    %v1484 = vor.u32 %v1482, %v1483
    %vm1485 = vcmp.lt.s32.totalorder %v1466, 1
    %vm1486 = vcmp.lt.s32.totalorder %v1466, 2
    %vm1487 = vcmp.lt.s32.totalorder %v1466, 3
    %vm1488 = vcmp.lt.s32.totalorder %v1466, 4
    %v1489 = vsel %vm1485, %v1469, %v1472
    %v1490 = vsel %vm1488, %v1478, 2102212464
    %v1491 = vsel %vm1487, %v1475, %v1490
    %v1492 = vsel %vm1486, %v1489, %v1491
    %v1493 = vsel %vm1485, %v1472, %v1475
    %v1494 = vsel %vm1488, %v1481, 920167782
    %v1495 = vsel %vm1487, %v1478, %v1494
    %v1496 = vsel %vm1486, %v1493, %v1495
    %v1497 = vsel %vm1485, %v1475, %v1478
    %v1498 = vsel %vm1488, %v1484, 1326507024
    %v1499 = vsel %vm1487, %v1481, %v1498
    %v1500 = vsel %vm1486, %v1497, %v1499
    %v1501 = vshll.u32 %v1461, 8
    %v1502 = vmul.u32.u64.compose %v1501, %v1500
    %v1503 = vextract.low.u32 %v1502
    %v1504 = vextract.high.u32 %v1502
    %v1505 = vmul.u32.u64.compose %v1501, %v1496
    %v1506 = vextract.low.u32 %v1505
    %v1507 = vextract.high.u32 %v1505
    %v1508 = vmul.u32 %v1501, %v1492
    %v1509 = vadd.s32 %v1504, %v1506
    %vm1510 = vc.u32 %v1504, %v1506
    %v1511 = vadd.s32 %v1507, 1
    %v1512 = vsel %vm1510, %v1511, %v1507
    %v1513 = vadd.s32 %v1508, %v1512
    %v1514 = vadd.s32 %v1513, 536870912
    %v1515 = vshrl.u32 %v1514, 30
    %v1516 = vshll.u32 %v1515, 30
    %v1517 = vsub.s32 %v1513, %v1516
    %vm1518 = vcmp.lt.s32.totalorder %v1517, 0
    %v1519 = vsub.s32 0, %v1517
    %v1520 = vsel %vm1518, %v1519, %v1517
    %v1521 = vclz %v1520
    %v1522 = vsub.s32 %v1521, 2
    %vm1523 = vcmp.gt.s32.totalorder 0, %v1522
    %v1524 = vsel %vm1523, 0, %v1522
    %v1525 = vsub.s32 32, %v1524
    %v1526 = vshll.u32 %v1517, %v1524
    %v1527 = vshrl.u32 %v1509, %v1525
    %v1528 = vor.u32 %v1526, %v1527
    %v1529 = vsub.s32 4294967266, %v1524
    %v1530 = vadd.s32 %v1529, 127
    %v1531 = vshll.u32 %v1530, 23
    %v1532 = vor.u32 4788187, %v1531
    %v1533 = vand.u32 2147483647, %v1532
    %v1535 = vcvt.s32.f32 %v1528
    %v1536 = vmul.f32 %v1535, %v1533
    %v1537 = vxor.u32 %v1536, 2147483648
    %v1538 = vsel %vm1455, %v1537, %v1536
    %v1539 = vsub.s32 4, %v1515
    %v1540 = vsel %vm1455, %v1539, %v1515
    %v1541 = vsel %vm1454, %v98, %v1538
    %v1542 = vsel %vm1454, 0, %v1540
    %v1543 = vcosq.f32.pop %v1541
    %v1544 = vsinq.f32.pop %v1541
    %vm1545 = vweird.f32 %v98
    %v1546 = vadd.s32 %v1542, 3
    %v1547 = vand.u32 %v1546, 3
    %vm1548 = vcmp.lt.s32.totalorder %v1547, 2
    %vm1549 = vcmp.eq.s32.totalorder %v1547, 0
    %v1550 = vxor.u32 %v1544, 2147483648
    %v1551 = vsel %vm1549, %v1543, %v1550
    %vm1552 = vcmp.eq.s32.totalorder %v1547, 2
    %v1553 = vxor.u32 %v1543, 2147483648
    %v1554 = vsel %vm1552, %v1553, %v1544
    %v1555 = vsel %vm1548, %v1551, %v1554
    %v1556 = vsel %vm1545, nan, %v1555
    %v1557 = vand.u32 2147483647, %v99
    %vm1558 = vcmp.le.f32.partialorder %v1557, 0.7853982
    %vm1559 = vcmp.lt.s32.totalorder %v99, 0
    %v1560 = vand.u32 %v99, 2139095040
    %v1561 = vshrl.u32 %v1560, 23
    %v1562 = vsub.s32 %v1561, 127
    %v1563 = vand.u32 2147483647, %v99
    %v1564 = vand.u32 %v1563, 8388607
    %v1565 = vor.u32 %v1564, 8388608
    %v1566 = vsub.s32 0, %v1565
    %v1567 = vadd.s32 %v1562, 1
    %vm1568 = vcmp.gt.s32.totalorder %v1567, 0
    %v1569 = vsel %vm1568, %v1567, 0
    %v1570 = vshrl.u32 %v1569, 5
    %v1571 = vand.u32 %v1569, 31
    %v1572 = vsub.s32 32, %v1571
    %v1573 = vshrl.u32 683565275, %v1572
    %v1574 = vshll.u32 683565275, %v1571
    %v1575 = vshrl.u32 2475754826, %v1572
    %v1576 = vor.u32 %v1574, %v1575
    %v1577 = vshll.u32 2475754826, %v1571
    %v1578 = vshrl.u32 2131351028, %v1572
    %v1579 = vor.u32 %v1577, %v1578
    %v1580 = vshll.u32 2131351028, %v1571
    %v1581 = vshrl.u32 2102212464, %v1572
    %v1582 = vor.u32 %v1580, %v1581
    %v1583 = vshll.u32 2102212464, %v1571
    %v1584 = vshrl.u32 920167782, %v1572
    %v1585 = vor.u32 %v1583, %v1584
    %v1586 = vshll.u32 920167782, %v1571
    %v1587 = vshrl.u32 1326507024, %v1572
    %v1588 = vor.u32 %v1586, %v1587
    %vm1589 = vcmp.lt.s32.totalorder %v1570, 1
    %vm1590 = vcmp.lt.s32.totalorder %v1570, 2
    %vm1591 = vcmp.lt.s32.totalorder %v1570, 3
    %vm1592 = vcmp.lt.s32.totalorder %v1570, 4
    %v1593 = vsel %vm1589, %v1573, %v1576
    %v1594 = vsel %vm1592, %v1582, 2102212464
    %v1595 = vsel %vm1591, %v1579, %v1594
    %v1596 = vsel %vm1590, %v1593, %v1595
    %v1597 = vsel %vm1589, %v1576, %v1579
    %v1598 = vsel %vm1592, %v1585, 920167782
    %v1599 = vsel %vm1591, %v1582, %v1598
    %v1600 = vsel %vm1590, %v1597, %v1599
    %v1601 = vsel %vm1589, %v1579, %v1582
    %v1602 = vsel %vm1592, %v1588, 1326507024
    %v1603 = vsel %vm1591, %v1585, %v1602
    %v1604 = vsel %vm1590, %v1601, %v1603
    %v1605 = vshll.u32 %v1565, 8
    %v1606 = vmul.u32.u64.compose %v1605, %v1604
    %v1607 = vextract.low.u32 %v1606
    %v1608 = vextract.high.u32 %v1606
    %v1609 = vmul.u32.u64.compose %v1605, %v1600
    %v1610 = vextract.low.u32 %v1609
    %v1611 = vextract.high.u32 %v1609
    %v1612 = vmul.u32 %v1605, %v1596
    %v1613 = vadd.s32 %v1608, %v1610
    %vm1614 = vc.u32 %v1608, %v1610
    %v1615 = vadd.s32 %v1611, 1
    %v1616 = vsel %vm1614, %v1615, %v1611
    %v1617 = vadd.s32 %v1612, %v1616
    %v1618 = vadd.s32 %v1617, 536870912
    %v1619 = vshrl.u32 %v1618, 30
    %v1620 = vshll.u32 %v1619, 30
    %v1621 = vsub.s32 %v1617, %v1620
    %vm1622 = vcmp.lt.s32.totalorder %v1621, 0
    %v1623 = vsub.s32 0, %v1621
    %v1624 = vsel %vm1622, %v1623, %v1621
    %v1625 = vclz %v1624
    %v1626 = vsub.s32 %v1625, 2
    %vm1627 = vcmp.gt.s32.totalorder 0, %v1626
    %v1628 = vsel %vm1627, 0, %v1626
    %v1629 = vsub.s32 32, %v1628
    %v1630 = vshll.u32 %v1621, %v1628
    %v1631 = vshrl.u32 %v1613, %v1629
    %v1632 = vor.u32 %v1630, %v1631
    %v1633 = vsub.s32 4294967266, %v1628
    %v1634 = vadd.s32 %v1633, 127
    %v1635 = vshll.u32 %v1634, 23
    %v1636 = vor.u32 4788187, %v1635
    %v1637 = vand.u32 2147483647, %v1636
    %v1639 = vcvt.s32.f32 %v1632
    %v1640 = vmul.f32 %v1639, %v1637
    %v1641 = vxor.u32 %v1640, 2147483648
    %v1642 = vsel %vm1559, %v1641, %v1640
    %v1643 = vsub.s32 4, %v1619
    %v1644 = vsel %vm1559, %v1643, %v1619
    %v1645 = vsel %vm1558, %v99, %v1642
    %v1646 = vsel %vm1558, 0, %v1644
    %v1647 = vcosq.f32.pop %v1645
    %v1648 = vsinq.f32.pop %v1645
    %vm1649 = vweird.f32 %v99
    %v1650 = vadd.s32 %v1646, 3
    %v1651 = vand.u32 %v1650, 3
    %vm1652 = vcmp.lt.s32.totalorder %v1651, 2
    %vm1653 = vcmp.eq.s32.totalorder %v1651, 0
    %v1654 = vxor.u32 %v1648, 2147483648
    %v1655 = vsel %vm1653, %v1647, %v1654
    %vm1656 = vcmp.eq.s32.totalorder %v1651, 2
    %v1657 = vxor.u32 %v1647, 2147483648
    %v1658 = vsel %vm1656, %v1657, %v1648
    %v1659 = vsel %vm1652, %v1655, %v1658
    %v1660 = vsel %vm1649, nan, %v1659
    %v1661 = vand.u32 2147483647, %v100
    %vm1662 = vcmp.le.f32.partialorder %v1661, 0.7853982
    %vm1663 = vcmp.lt.s32.totalorder %v100, 0
    %v1664 = vand.u32 %v100, 2139095040
    %v1665 = vshrl.u32 %v1664, 23
    %v1666 = vsub.s32 %v1665, 127
    %v1667 = vand.u32 2147483647, %v100
    %v1668 = vand.u32 %v1667, 8388607
    %v1669 = vor.u32 %v1668, 8388608
    %v1670 = vsub.s32 0, %v1669
    %v1671 = vadd.s32 %v1666, 1
    %vm1672 = vcmp.gt.s32.totalorder %v1671, 0
    %v1673 = vsel %vm1672, %v1671, 0
    %v1674 = vshrl.u32 %v1673, 5
    %v1675 = vand.u32 %v1673, 31
    %v1676 = vsub.s32 32, %v1675
    %v1677 = vshrl.u32 683565275, %v1676
    %v1678 = vshll.u32 683565275, %v1675
    %v1679 = vshrl.u32 2475754826, %v1676
    %v1680 = vor.u32 %v1678, %v1679
    %v1681 = vshll.u32 2475754826, %v1675
    %v1682 = vshrl.u32 2131351028, %v1676
    %v1683 = vor.u32 %v1681, %v1682
    %v1684 = vshll.u32 2131351028, %v1675
    %v1685 = vshrl.u32 2102212464, %v1676
    %v1686 = vor.u32 %v1684, %v1685
    %v1687 = vshll.u32 2102212464, %v1675
    %v1688 = vshrl.u32 920167782, %v1676
    %v1689 = vor.u32 %v1687, %v1688
    %v1690 = vshll.u32 920167782, %v1675
    %v1691 = vshrl.u32 1326507024, %v1676
    %v1692 = vor.u32 %v1690, %v1691
    %vm1693 = vcmp.lt.s32.totalorder %v1674, 1
    %vm1694 = vcmp.lt.s32.totalorder %v1674, 2
    %vm1695 = vcmp.lt.s32.totalorder %v1674, 3
    %vm1696 = vcmp.lt.s32.totalorder %v1674, 4
    %v1697 = vsel %vm1693, %v1677, %v1680
    %v1698 = vsel %vm1696, %v1686, 2102212464
    %v1699 = vsel %vm1695, %v1683, %v1698
    %v1700 = vsel %vm1694, %v1697, %v1699
    %v1701 = vsel %vm1693, %v1680, %v1683
    %v1702 = vsel %vm1696, %v1689, 920167782
    %v1703 = vsel %vm1695, %v1686, %v1702
    %v1704 = vsel %vm1694, %v1701, %v1703
    %v1705 = vsel %vm1693, %v1683, %v1686
    %v1706 = vsel %vm1696, %v1692, 1326507024
    %v1707 = vsel %vm1695, %v1689, %v1706
    %v1708 = vsel %vm1694, %v1705, %v1707
    %v1709 = vshll.u32 %v1669, 8
    %v1710 = vmul.u32.u64.compose %v1709, %v1708
    %v1711 = vextract.low.u32 %v1710
    %v1712 = vextract.high.u32 %v1710
    %v1713 = vmul.u32.u64.compose %v1709, %v1704
    %v1714 = vextract.low.u32 %v1713
    %v1715 = vextract.high.u32 %v1713
    %v1716 = vmul.u32 %v1709, %v1700
    %v1717 = vadd.s32 %v1712, %v1714
    %vm1718 = vc.u32 %v1712, %v1714
    %v1719 = vadd.s32 %v1715, 1
    %v1720 = vsel %vm1718, %v1719, %v1715
    %v1721 = vadd.s32 %v1716, %v1720
    %v1722 = vadd.s32 %v1721, 536870912
    %v1723 = vshrl.u32 %v1722, 30
    %v1724 = vshll.u32 %v1723, 30
    %v1725 = vsub.s32 %v1721, %v1724
    %vm1726 = vcmp.lt.s32.totalorder %v1725, 0
    %v1727 = vsub.s32 0, %v1725
    %v1728 = vsel %vm1726, %v1727, %v1725
    %v1729 = vclz %v1728
    %v1730 = vsub.s32 %v1729, 2
    %vm1731 = vcmp.gt.s32.totalorder 0, %v1730
    %v1732 = vsel %vm1731, 0, %v1730
    %v1733 = vsub.s32 32, %v1732
    %v1734 = vshll.u32 %v1725, %v1732
    %v1735 = vshrl.u32 %v1717, %v1733
    %v1736 = vor.u32 %v1734, %v1735
    %v1737 = vsub.s32 4294967266, %v1732
    %v1738 = vadd.s32 %v1737, 127
    %v1739 = vshll.u32 %v1738, 23
    %v1740 = vor.u32 4788187, %v1739
    %v1741 = vand.u32 2147483647, %v1740
    %v1743 = vcvt.s32.f32 %v1736
    %v1744 = vmul.f32 %v1743, %v1741
    %v1745 = vxor.u32 %v1744, 2147483648
    %v1746 = vsel %vm1663, %v1745, %v1744
    %v1747 = vsub.s32 4, %v1723
    %v1748 = vsel %vm1663, %v1747, %v1723
    %v1749 = vsel %vm1662, %v100, %v1746
    %v1750 = vsel %vm1662, 0, %v1748
    %v1751 = vcosq.f32.pop %v1749
    %v1752 = vsinq.f32.pop %v1749
    %vm1753 = vweird.f32 %v100
    %v1754 = vadd.s32 %v1750, 3
    %v1755 = vand.u32 %v1754, 3
    %vm1756 = vcmp.lt.s32.totalorder %v1755, 2
    %vm1757 = vcmp.eq.s32.totalorder %v1755, 0
    %v1758 = vxor.u32 %v1752, 2147483648
    %v1759 = vsel %vm1757, %v1751, %v1758
    %vm1760 = vcmp.eq.s32.totalorder %v1755, 2
    %v1761 = vxor.u32 %v1751, 2147483648
    %v1762 = vsel %vm1760, %v1761, %v1752
    %v1763 = vsel %vm1756, %v1759, %v1762
    %v1764 = vsel %vm1753, nan, %v1763
    %1765 = vst [vmem:[#allocation5] sm:$0xff] %v204
    %1766 = vst [vmem:[#allocation5 + $0x8] sm:$0xff] %v308
    %1767 = vst [vmem:[#allocation5 + $0x10] sm:$0xff] %v412
    %1768 = vst [vmem:[#allocation5 + $0x18] sm:$0xff] %v516
    %1769 = vst [vmem:[#allocation5 + $0x20] sm:$0xff] %v620
    %1770 = vst [vmem:[#allocation5 + $0x28] sm:$0xff] %v724
    %1771 = vst [vmem:[#allocation5 + $0x30] sm:$0xff] %v828
    %1772 = vst [vmem:[#allocation5 + $0x38] sm:$0xff] %v932
    %1773 = vst [vmem:[#allocation5 + $0x40] sm:$0xff] %v1036
    %1774 = vst [vmem:[#allocation5 + $0x48] sm:$0xff] %v1140
    %1775 = vst [vmem:[#allocation5 + $0x50] sm:$0xff] %v1244
    %1776 = vst [vmem:[#allocation5 + $0x58] sm:$0xff] %v1348
    %1777 = vst [vmem:[#allocation5 + $0x60] sm:$0xff] %v1452
    %1778 = vst [vmem:[#allocation5 + $0x68] sm:$0xff] %v1556
    %1779 = vst [vmem:[#allocation5 + $0x70] sm:$0xff] %v1660
    %1780 = vst [vmem:[#allocation5 + $0x78] sm:$0xff] %v1764
    // Predicated region
    $region10: #{tpu_custom_call.1} parent=1 // pred_check
      _
    $region11: #{tpu_custom_call.1} parent=1 // pred_check_branch
      %1782 = sbr.rel (0) target = $region13
    $region12: #{tpu_custom_call.1} parent=1 // pred_region
      %s1784 = ssub.s32 2048, 2048
      %1785 = vsyncadd [#allocation4], %s1784
      %s1786 = sshll.u32 [#allocation5], 4
      %s1787 = int_to_ptr.vmem [resolvable:$true] %s1786
      %1792 = dma.vmem_to_hbm [thread:$0]  %s1787, 2048, %s1, [#allocation4], 128, 128, 8
    $region13: #{tpu_custom_call.1} parent=1 // pred_fallthru
      _
    // Predicated region
    $region14: #{tpu_custom_call.1} parent=1 // pred_check
      _
    $region15: #{tpu_custom_call.1} parent=1 // pred_check_branch
      %1794 = sbr.rel (0) target = $region17
    $region16: #{tpu_custom_call.1} parent=1 // pred_region
      %1795 = dma.done [#allocation4], 2048
    $region17: #{tpu_custom_call.1} parent=1 // pred_fallthru
      _
    %1796 = vsyncpa [#allocation3], 1
    %1797 = vsyncpa [#allocation4], 1

</llo_original>
